<compile_context>
chip_gen: v6e
topology: v6e:2x2x1
jax: 0.10.0
libtpu: 0.0.40
codegen_flags: <defaults>
</compile_context>

<pallas_src>
import math
from functools import partial

import numpy as np
import jax
import jax.numpy as jnp
from jax import lax
from jax.experimental import pallas as pl
from jax.experimental.pallas import tpu as pltpu  # noqa: F401  (TPU backend)


# ----------------------------- config -------------------------------------- #
class Config:
    n_enc_vocab = 16
    n_enc_seq = 8
    d_hidn = 32
    n_head = 4
    d_head = 8
    d_ff = 64
    n_layer = 2
    i_pad = 0
    layer_norm_epsilon = 1e-12
    dropout = 0.0  # eval mode -> identity


# ----------------------- sinusoid positional table -------------------------- #
def get_sinusoid_encoding_table(n_seq, d_hidn):
    pos = np.arange(n_seq)[:, None].astype(np.float64)
    i = np.arange(d_hidn)[None, :]
    angle = pos / np.power(10000.0, 2 * (i // 2) / d_hidn)
    table = np.zeros((n_seq, d_hidn), dtype=np.float64)
    table[:, 0::2] = np.sin(angle[:, 0::2])
    table[:, 1::2] = np.cos(angle[:, 1::2])
    return table.astype(np.float32)


# --------------------------- Pallas kernel ---------------------------------- #
def _encoder_stack_kernel(
    x_ref, bias_ref, hm_ref, sm_ref, wqkv_ref, wo_ref, w1_ref, w2_ref, vec_ref,
    out_ref, prob_ref,
    *, B, S, D, H, dh, dff, n_layer, eps,
):
    """Whole encoder stack for the whole batch in one invocation (all 2-D ops).

    x_ref    : (BS, D)           f32  embedded inputs, BS = B*S
    bias_ref : (BS, H*BS)        f32  additive mask: -1e9 on pad keys / cross-batch
    hm_ref   : (H*BS, Hd)        f32  head block mask: [j//BS == c//dh]
    sm_ref   : (H*BS, H*BS)      f32  segment mask:    [j//BS == j'//BS]
    wqkv_ref : (L, D, 3*Hd)      f32  fused Q/K/V weights (wq pre-scaled by 1/sqrt(dh))
    wo_ref   : (L, Hd, D)        f32  attention output projection
    w1_ref   : (L, D, d_ff)      f32  FFN conv1 (k=1)
    w2_ref   : (L, d_ff, D)      f32  FFN conv2 (k=1)
    vec_ref  : (L, 8, VW)        f32  packed [bqkv, bo, g1, be1, b1, b2, g2, be2]
    out_ref  : (BS, D)           f32
    prob_ref : (BS, L*H*BS)      f32  lane-dense attention probabilities
    """
    Hd = H * dh
    BS = B * S
    HBS = H * BS

    x = x_ref[...]                       # (BS, D)
    bias = bias_ref[...]                 # (BS, HBS)
    headmask = hm_ref[...]               # (HBS, Hd)
    segmask = sm_ref[...]                # (HBS, HBS)
    inv_sqrt2 = jnp.float32(1.0 / math.sqrt(2.0))

    def layer_norm(y, g, b):
        mu = jnp.mean(y, axis=-1, keepdims=True)
        var = jnp.mean((y - mu) ** 2, axis=-1, keepdims=True)
        return (y - mu) * lax.rsqrt(var + jnp.float32(eps)) * g + b

    for layer in range(n_layer):                     # static 2-layer unroll
        wqkv = wqkv_ref[layer]                       # (D, 3*Hd)
        wo = wo_ref[layer]                           # (Hd, D)
        w1 = w1_ref[layer]                           # (D, dff)
        w2 = w2_ref[layer]                           # (dff, D)
        vec = vec_ref[layer]                         # (8, VW)
        bqkv = vec[0:1, :3 * Hd]
        bo, g1, be1 = vec[1:2, :D], vec[2:3, :D], vec[3:4, :D]
        b1 = vec[4:5, :dff]
        b2, g2, be2 = vec[5:6, :D], vec[6:7, :D], vec[7:8, :D]

        # Fused QKV projection for the whole batch: one MXU matmul.
        qkv = jnp.dot(x, wqkv, preferred_element_type=jnp.float32) + bqkv   # (BS, 3*Hd)
        q = qkv[:, :Hd]
        k = qkv[:, Hd:2 * Hd]
        v = qkv[:, 2 * Hd:3 * Hd]

        # Block-diagonal K / V: tile along sublanes, zero cross-head columns.
        k_bd = jnp.concatenate([k] * H, axis=0) * headmask                  # (HBS, Hd)
        v_bd = jnp.concatenate([v] * H, axis=0) * headmask                  # (HBS, Hd)

        # scores[n, h*BS + m] = Q_h[n] . K_h[m]   (wq pre-scaled by 1/sqrt(dh))
        scores = lax.dot_general(
            q, k_bd, (((1,), (1,)), ((), ())),
            preferred_element_type=jnp.float32) + bias                      # (BS, HBS)

        # Segmented softmax per (batch, head) block of S keys.  Row-global max
        # subtraction is exact (same constant within each segment); masked and
        # cross-batch lanes underflow to exactly 0.
        m = jnp.max(scores, axis=-1, keepdims=True)
        e = jnp.exp(scores - m)
        denom = jnp.dot(e, segmask, preferred_element_type=jnp.float32)     # per-segment sums
        p = e * pl.reciprocal(denom, approx=True)                           # (BS, HBS)

        # per-layer lane-dense prob store; nothing carried to the next layer
        prob_ref[:, layer * HBS:(layer + 1) * HBS] = p

        # context lands directly in head-concatenated (BS, Hd) layout
        ctx = jnp.dot(p, v_bd, preferred_element_type=jnp.float32)          # (BS, Hd)

        # attention output projection + residual + LayerNorm1
        att = jnp.dot(ctx, wo, preferred_element_type=jnp.float32) + bo
        y1 = layer_norm(x + att, g1, be1)

        # position-wise FFN (Conv1d k=1 == Linear), exact erf GELU
        h1 = jnp.dot(y1, w1, preferred_element_type=jnp.float32) + b1
        h1 = 0.5 * h1 * (1.0 + lax.erf(h1 * inv_sqrt2))
        ffn = jnp.dot(h1, w2, preferred_element_type=jnp.float32) + b2
        x = layer_norm(ffn + y1, g2, be2)                                   # LayerNorm2

    out_ref[...] = x


# ------------------------- parameter initialization ------------------------- #
def init_params(cfg, key):
    D, H, dh, dff = cfg.d_hidn, cfg.n_head, cfg.d_head, cfg.d_ff
    keys = jax.random.split(key, 1 + cfg.n_layer)
    enc_emb = jax.random.normal(keys[0], (cfg.n_enc_vocab, D), jnp.float32)
    pos_table = jnp.asarray(get_sinusoid_encoding_table(cfg.n_enc_seq + 1, D))

    layer_params = []
    for li in range(cfg.n_layer):
        lk = jax.random.split(keys[1 + li], 6)
        s = 0.02
        p = {
            "wq": jax.random.normal(lk[0], (D, H * dh), jnp.float32) * s,
            "wk": jax.random.normal(lk[1], (D, H * dh), jnp.float32) * s,
            "wv": jax.random.normal(lk[2], (D, H * dh), jnp.float32) * s,
            "bq": jnp.zeros((H * dh,), jnp.float32),
            "bk": jnp.zeros((H * dh,), jnp.float32),
            "bv": jnp.zeros((H * dh,), jnp.float32),
            "wo": jax.random.normal(lk[3], (H * dh, D), jnp.float32) * s,
            "bo": jnp.zeros((D,), jnp.float32),
            "g1": jnp.ones((D,), jnp.float32),
            "be1": jnp.zeros((D,), jnp.float32),
            "w1": jax.random.normal(lk[4], (D, dff), jnp.float32) * s,   # conv1 (k=1)
            "b1": jnp.zeros((dff,), jnp.float32),
            "w2": jax.random.normal(lk[5], (dff, D), jnp.float32) * s,   # conv2 (k=1)
            "b2": jnp.zeros((D,), jnp.float32),
            "g2": jnp.ones((D,), jnp.float32),
            "be2": jnp.zeros((D,), jnp.float32),
        }
        layer_params.append(p)
    return enc_emb, pos_table, layer_params


def pack_params(cfg, layer_params):
    """Stack per-layer params, fold 1/sqrt(d_head) into wq/bq, pack 1-D vectors."""
    D, H, dh, dff = cfg.d_hidn, cfg.n_head, cfg.d_head, cfg.d_ff
    VW = max(3 * H * dh, dff, D)
    scale = jnp.float32(1.0 / math.sqrt(dh))

    def pad_row(v):
        return jnp.pad(v, (0, VW - v.shape[0]))

    wqkv_s, wo_s, w1_s, w2_s, vec_s = [], [], [], [], []
    for p in layer_params:
        wqkv_s.append(jnp.concatenate([p["wq"] * scale, p["wk"], p["wv"]], axis=1))
        wo_s.append(p["wo"])
        w1_s.append(p["w1"])
        w2_s.append(p["w2"])
        bqkv = jnp.concatenate([p["bq"] * scale, p["bk"], p["bv"]], axis=0)
        rows = [bqkv, p["bo"], p["g1"], p["be1"], p["b1"], p["b2"], p["g2"], p["be2"]]
        vec_s.append(jnp.stack([pad_row(r) for r in rows], axis=0))           # (8, VW)
    return (jnp.stack(wqkv_s), jnp.stack(wo_s), jnp.stack(w1_s),
            jnp.stack(w2_s), jnp.stack(vec_s))


# ------------------------------- Encoder ------------------------------------ #
def encoder_pallas(x_emb, pad_mask, packed, cfg):
    """x_emb: (B,S,D) f32 embedded inputs; pad_mask: (B,S) bool key-is-pad."""
    B, S, D = x_emb.shape
    H, dh, dff, L = cfg.n_head, cfg.d_head, cfg.d_ff, cfg.n_layer
    BS, Hd, HBS = B * S, H * dh, H * B * S

    wqkv_s, wo_s, w1_s, w2_s, vec_s = packed

    # additive attention bias (0 / -1e9): key is pad OR different batch, tiled per head
    batch_ids = jnp.repeat(jnp.arange(B), S)                       # (BS,)
    cross = batch_ids[:, None] != batch_ids[None, :]               # (BS, BS)
    keypad = pad_mask.reshape(-1)[None, :]                         # (1, BS)
    base = jnp.where(cross | keypad, jnp.float32(-1e9), jnp.float32(0.0))
    bias = jnp.tile(base, (1, H))                                  # (BS, H*BS)

    # constant 0/1 block-diagonal masks (host-side numpy constants)
    headmask = np.kron(np.eye(H, dtype=np.float32), np.ones((BS, dh), np.float32))   # (H*BS, Hd)
    segmask = np.kron(np.eye(H, dtype=np.float32), np.ones((BS, BS), np.float32))    # (H*BS, H*BS)

    kernel = partial(_encoder_stack_kernel, B=B, S=S, D=D, H=H, dh=dh,
                     dff=dff, n_layer=L, eps=cfg.layer_norm_epsilon)
    out_shape = [
        jax.ShapeDtypeStruct((BS, D), jnp.float32),
        jax.ShapeDtypeStruct((BS, L * HBS), jnp.float32),
    ]
    # Single grid-less invocation: every operand lives whole in VMEM.
    out2, prob_flat = pl.pallas_call(kernel, out_shape=out_shape)(
        x_emb.reshape(BS, D), bias,
        jnp.asarray(headmask), jnp.asarray(segmask),
        wqkv_s, wo_s, w1_s, w2_s, vec_s)

    outputs = out2.reshape(B, S, D)

    # prob_flat[n, l*H*BS + h*BS + m] with n=b*S+q, m=b'*S+k; keep b'==b blocks.
    b_idx = jnp.arange(B)
    p6 = prob_flat.reshape(B, S, L, H, B, S)
    probs = p6[b_idx, :, :, :, b_idx, :]                # (B, Sq, L, H, Sk)
    probs = probs.transpose(2, 0, 3, 1, 4)              # (L, B, H, Sq, Sk)
    attn_probs = [probs[l] for l in range(L)]
    return outputs, attn_probs


def embed_inputs(inputs, enc_emb, pos_table, cfg):
    B, S = inputs.shape
    positions = jnp.broadcast_to(
        jnp.arange(S, dtype=inputs.dtype)[None, :], (B, S)) + 1
    pad_mask = inputs == cfg.i_pad
    positions = jnp.where(pad_mask, 0, positions)
    x = jnp.take(enc_emb, inputs, axis=0) + jnp.take(pos_table, positions, axis=0)
    return x, pad_mask


def encoder_forward(inputs, enc_emb, pos_table, packed, cfg):
    """inputs: (B, S) int32 token ids.  Returns (outputs, [attn_prob per layer])."""
    x, pad_mask = embed_inputs(inputs, enc_emb, pos_table, cfg)
    return encoder_pallas(x, pad_mask, packed, cfg)


# ---------------------- pure-JAX reference (parity check) ------------------- #
def encoder_reference(x_emb, pad_mask, layer_params, cfg):
    B, S, D = x_emb.shape
    H, dh = cfg.n_head, cfg.d_head
    eps = cfg.layer_norm_epsilon

    def ln(y, g, b):
        mu = jnp.mean(y, axis=-1, keepdims=True)
        var = jnp.mean((y - mu) ** 2, axis=-1, keepdims=True)
        return (y - mu) * lax.rsqrt(var + eps) * g + b

    x = x_emb
    attn_mask = jnp.broadcast_to(pad_mask[:, None, :], (B, S, S))   # key-pad
    probs = []
    for p in layer_params:
        q = (x @ p["wq"] + p["bq"]).reshape(B, S, H, dh).transpose(0, 2, 1, 3)
        k = (x @ p["wk"] + p["bk"]).reshape(B, S, H, dh).transpose(0, 2, 1, 3)
        v = (x @ p["wv"] + p["bv"]).reshape(B, S, H, dh).transpose(0, 2, 1, 3)
        s = jnp.einsum('bhqd,bhkd->bhqk', q, k) / math.sqrt(dh)
        s = jnp.where(attn_mask[:, None, :, :], -1e9, s)
        pr = jax.nn.softmax(s, axis=-1)
        ctx = jnp.einsum('bhqk,bhkd->bhqd', pr, v).transpose(0, 2, 1, 3).reshape(B, S, H * dh)
        att = ctx @ p["wo"] + p["bo"]
        y1 = ln(x + att, p["g1"], p["be1"])
        h1 = y1 @ p["w1"] + p["b1"]
        h1 = 0.5 * h1 * (1.0 + lax.erf(h1 / math.sqrt(2.0)))
        ffn = h1 @ p["w2"] + p["b2"]
        x = ln(ffn + y1, p["g2"], p["be2"])
        probs.append(pr)
    return x, probs


# --------------------------------- main ------------------------------------- #
if __name__ == "__main__":
    cfg = Config()
    key = jax.random.PRNGKey(0)
    pkey, ikey = jax.random.split(key)

    enc_emb, pos_table, layer_params = init_params(cfg, pkey)
    packed = pack_params(cfg, layer_params)

    B, S = 2, cfg.n_enc_seq
    inputs = jax.random.randint(ikey, (B, S), 1, cfg.n_enc_vocab, dtype=jnp.int32)
    inputs = inputs.at[:, -2:].set(cfg.i_pad)   # trailing padding to exercise the mask

    outputs, attn_probs = encoder_forward(inputs, enc_emb, pos_table, packed, cfg)
    outputs = jax.block_until_ready(outputs)
    for p in attn_probs:
        jax.block_until_ready(p)

    assert outputs.shape == (B, S, cfg.d_hidn)
    assert len(attn_probs) == cfg.n_layer
    assert attn_probs[0].shape == (B, cfg.n_head, S, S)
    assert bool(jnp.all(jnp.isfinite(outputs)))
    assert all(bool(jnp.all(jnp.isfinite(p))) for p in attn_probs)

    # parity vs. pure-JAX reference of the PyTorch module (loose tol: the kernel
    # uses the EUP approximate reciprocal in the softmax).
    x_emb, pad_mask = embed_inputs(inputs, enc_emb, pos_table, cfg)
    ref_out, ref_probs = encoder_reference(x_emb, pad_mask, layer_params, cfg)
    assert float(jnp.max(jnp.abs(outputs - ref_out))) < 2e-2
    for pk, pr in zip(attn_probs, ref_probs):
        assert float(jnp.max(jnp.abs(pk - pr))) < 1e-2

    print("KERNEL_OK")
</pallas_src>

<mosaic_0001>
module attributes {stable_mosaic.version = 11 : i64} {
  func.func @_encoder_stack_kernel(%arg0: memref<16x32xf32, #tpu.memory_space<vmem>>, %arg1: memref<16x64xf32, #tpu.memory_space<vmem>>, %arg2: memref<64x32xf32, #tpu.memory_space<vmem>>, %arg3: memref<64x64xf32, #tpu.memory_space<vmem>>, %arg4: memref<2x32x96xf32, #tpu.memory_space<vmem>>, %arg5: memref<2x32x32xf32, #tpu.memory_space<vmem>>, %arg6: memref<2x32x64xf32, #tpu.memory_space<vmem>>, %arg7: memref<2x64x32xf32, #tpu.memory_space<vmem>>, %arg8: memref<2x8x96xf32, #tpu.memory_space<vmem>>, %arg9: memref<16x32xf32, #tpu.memory_space<vmem>>, %arg10: memref<16x128xf32, #tpu.memory_space<vmem>>) attributes {dimension_semantics = [], scalar_prefetch = 0 : i64, scratch_operands = 0 : i64, tpu.core_type = #tpu.core_type<tc>} {
    %c0 = arith.constant 0 : index
    %c0_0 = arith.constant 0 : index
    %0 = vector.load %arg0[%c0, %c0_0] : memref<16x32xf32, #tpu.memory_space<vmem>>, vector<16x32xf32>
    %c0_1 = arith.constant 0 : index
    %c0_2 = arith.constant 0 : index
    %1 = vector.load %arg1[%c0_1, %c0_2] : memref<16x64xf32, #tpu.memory_space<vmem>>, vector<16x64xf32>
    %c0_3 = arith.constant 0 : index
    %c0_4 = arith.constant 0 : index
    %2 = vector.load %arg2[%c0_3, %c0_4] : memref<64x32xf32, #tpu.memory_space<vmem>>, vector<64x32xf32>
    %c0_5 = arith.constant 0 : index
    %c0_6 = arith.constant 0 : index
    %3 = vector.load %arg3[%c0_5, %c0_6] : memref<64x64xf32, #tpu.memory_space<vmem>>, vector<64x64xf32>
    %c0_7 = arith.constant 0 : index
    %c0_8 = arith.constant 0 : index
    %c0_9 = arith.constant 0 : index
    %4 = vector.load %arg4[%c0_7, %c0_8, %c0_9] : memref<2x32x96xf32, #tpu.memory_space<vmem>>, vector<1x32x96xf32>
    %5 = vector.shape_cast %4 : vector<1x32x96xf32> to vector<32x96xf32>
    %c0_10 = arith.constant 0 : index
    %c0_11 = arith.constant 0 : index
    %c0_12 = arith.constant 0 : index
    %6 = vector.load %arg5[%c0_10, %c0_11, %c0_12] : memref<2x32x32xf32, #tpu.memory_space<vmem>>, vector<1x32x32xf32>
    %7 = vector.shape_cast %6 : vector<1x32x32xf32> to vector<32x32xf32>
    %c0_13 = arith.constant 0 : index
    %c0_14 = arith.constant 0 : index
    %c0_15 = arith.constant 0 : index
    %8 = vector.load %arg6[%c0_13, %c0_14, %c0_15] : memref<2x32x64xf32, #tpu.memory_space<vmem>>, vector<1x32x64xf32>
    %9 = vector.shape_cast %8 : vector<1x32x64xf32> to vector<32x64xf32>
    %c0_16 = arith.constant 0 : index
    %c0_17 = arith.constant 0 : index
    %c0_18 = arith.constant 0 : index
    %10 = vector.load %arg7[%c0_16, %c0_17, %c0_18] : memref<2x64x32xf32, #tpu.memory_space<vmem>>, vector<1x64x32xf32>
    %11 = vector.shape_cast %10 : vector<1x64x32xf32> to vector<64x32xf32>
    %c0_19 = arith.constant 0 : index
    %c0_20 = arith.constant 0 : index
    %c0_21 = arith.constant 0 : index
    %12 = vector.load %arg8[%c0_19, %c0_20, %c0_21] : memref<2x8x96xf32, #tpu.memory_space<vmem>>, vector<1x8x96xf32>
    %13 = vector.shape_cast %12 : vector<1x8x96xf32> to vector<8x96xf32>
    %14 = vector.extract_strided_slice %13 {offsets = [0, 0], sizes = [1, 96], strides = [1, 1]} : vector<8x96xf32> to vector<1x96xf32>
    %15 = vector.extract_strided_slice %13 {offsets = [1, 0], sizes = [1, 32], strides = [1, 1]} : vector<8x96xf32> to vector<1x32xf32>
    %16 = vector.extract_strided_slice %13 {offsets = [2, 0], sizes = [1, 32], strides = [1, 1]} : vector<8x96xf32> to vector<1x32xf32>
    %17 = vector.extract_strided_slice %13 {offsets = [3, 0], sizes = [1, 32], strides = [1, 1]} : vector<8x96xf32> to vector<1x32xf32>
    %18 = vector.extract_strided_slice %13 {offsets = [4, 0], sizes = [1, 64], strides = [1, 1]} : vector<8x96xf32> to vector<1x64xf32>
    %19 = vector.extract_strided_slice %13 {offsets = [5, 0], sizes = [1, 32], strides = [1, 1]} : vector<8x96xf32> to vector<1x32xf32>
    %20 = vector.extract_strided_slice %13 {offsets = [6, 0], sizes = [1, 32], strides = [1, 1]} : vector<8x96xf32> to vector<1x32xf32>
    %21 = vector.extract_strided_slice %13 {offsets = [7, 0], sizes = [1, 32], strides = [1, 1]} : vector<8x96xf32> to vector<1x32xf32>
    %cst = arith.constant dense<0.000000e+00> : vector<16x96xf32>
    %22 = tpu.matmul %0, %5, %cst {dimension_numbers = #tpu.dot_dimension_numbers<[1], [0], [0], [1], [0, 0, 1, 1], [], []>} : vector<16x32xf32>, vector<32x96xf32>, vector<16x96xf32> -> vector<16x96xf32>
    %23 = vector.broadcast %14 : vector<1x96xf32> to vector<16x96xf32>
    %24 = arith.addf %22, %23 : vector<16x96xf32>
    %25 = vector.extract_strided_slice %24 {offsets = [0, 0], sizes = [16, 32], strides = [1, 1]} : vector<16x96xf32> to vector<16x32xf32>
    %26 = vector.extract_strided_slice %24 {offsets = [0, 32], sizes = [16, 32], strides = [1, 1]} : vector<16x96xf32> to vector<16x32xf32>
    %27 = vector.extract_strided_slice %24 {offsets = [0, 64], sizes = [16, 32], strides = [1, 1]} : vector<16x96xf32> to vector<16x32xf32>
    %28 = tpu.concatenate %26, %26, %26, %26 in 0 : vector<16x32xf32>, vector<16x32xf32>, vector<16x32xf32>, vector<16x32xf32> -> vector<64x32xf32>
    %29 = arith.mulf %28, %2 : vector<64x32xf32>
    %30 = tpu.concatenate %27, %27, %27, %27 in 0 : vector<16x32xf32>, vector<16x32xf32>, vector<16x32xf32>, vector<16x32xf32> -> vector<64x32xf32>
    %31 = arith.mulf %30, %2 : vector<64x32xf32>
    %cst_22 = arith.constant dense<0.000000e+00> : vector<16x64xf32>
    %32 = tpu.matmul %25, %29, %cst_22 {dimension_numbers = #tpu.dot_dimension_numbers<[1], [1], [0], [0], [0, 0, 1, 0], [], []>} : vector<16x32xf32>, vector<64x32xf32>, vector<16x64xf32> -> vector<16x64xf32>
    %33 = arith.addf %32, %1 : vector<16x64xf32>
    %cst_23 = arith.constant dense<0xFF800000> : vector<16xf32>
    %34 = vector.multi_reduction <maximumf>, %33, %cst_23 [1] : vector<16x64xf32> to vector<16xf32>
    %35 = vector.shape_cast %34 : vector<16xf32> to vector<16x1xf32>
    %36 = vector.broadcast %35 : vector<16x1xf32> to vector<16x64xf32>
    %37 = arith.subf %33, %36 : vector<16x64xf32>
    %38 = math.exp %37 : vector<16x64xf32>
    %cst_24 = arith.constant dense<0.000000e+00> : vector<16x64xf32>
    %39 = tpu.matmul %38, %3, %cst_24 {dimension_numbers = #tpu.dot_dimension_numbers<[1], [0], [0], [1], [0, 0, 1, 1], [], []>} : vector<16x64xf32>, vector<64x64xf32>, vector<16x64xf32> -> vector<16x64xf32>
    %40 = tpu.reciprocal %39 {approx = true} : vector<16x64xf32> -> vector<16x64xf32>
    %41 = arith.mulf %38, %40 : vector<16x64xf32>
    %c0_25 = arith.constant 0 : index
    %c0_26 = arith.constant 0 : index
    %42 = vector.load %arg10[%c0_25, %c0_26] : memref<16x128xf32, #tpu.memory_space<vmem>>, vector<16x64xf32>
    tpu.vector_store %arg10[%c0_25, %c0_26], %41 {strides = array<i32>} : memref<16x128xf32, #tpu.memory_space<vmem>>, vector<16x64xf32>,
    %cst_27 = arith.constant dense<0.000000e+00> : vector<16x32xf32>
    %43 = tpu.matmul %41, %31, %cst_27 {dimension_numbers = #tpu.dot_dimension_numbers<[1], [0], [0], [1], [0, 0, 1, 1], [], []>} : vector<16x64xf32>, vector<64x32xf32>, vector<16x32xf32> -> vector<16x32xf32>
    %cst_28 = arith.constant dense<0.000000e+00> : vector<16x32xf32>
    %44 = tpu.matmul %43, %7, %cst_28 {dimension_numbers = #tpu.dot_dimension_numbers<[1], [0], [0], [1], [0, 0, 1, 1], [], []>} : vector<16x32xf32>, vector<32x32xf32>, vector<16x32xf32> -> vector<16x32xf32>
    %45 = vector.broadcast %15 : vector<1x32xf32> to vector<16x32xf32>
    %46 = arith.addf %44, %45 : vector<16x32xf32>
    %47 = arith.addf %0, %46 : vector<16x32xf32>
    %cst_29 = arith.constant dense<0.000000e+00> : vector<16xf32>
    %48 = vector.multi_reduction <add>, %47, %cst_29 [1] : vector<16x32xf32> to vector<16xf32>
    %49 = vector.shape_cast %48 : vector<16xf32> to vector<16x1xf32>
    %cst_30 = arith.constant 3.200000e+01 : f32
    %50 = vector.broadcast %cst_30 : f32 to vector<16x1xf32>
    %51 = arith.divf %49, %50 : vector<16x1xf32>
    %52 = vector.broadcast %51 : vector<16x1xf32> to vector<16x32xf32>
    %53 = arith.subf %47, %52 : vector<16x32xf32>
    %54 = arith.mulf %53, %53 : vector<16x32xf32>
    %cst_31 = arith.constant dense<0.000000e+00> : vector<16xf32>
    %55 = vector.multi_reduction <add>, %54, %cst_31 [1] : vector<16x32xf32> to vector<16xf32>
    %56 = vector.shape_cast %55 : vector<16xf32> to vector<16x1xf32>
    %cst_32 = arith.constant 3.200000e+01 : f32
    %57 = vector.broadcast %cst_32 : f32 to vector<16x1xf32>
    %58 = arith.divf %56, %57 : vector<16x1xf32>
    %59 = vector.broadcast %51 : vector<16x1xf32> to vector<16x32xf32>
    %60 = arith.subf %47, %59 : vector<16x32xf32>
    %cst_33 = arith.constant 9.99999996E-13 : f32
    %61 = vector.broadcast %cst_33 : f32 to vector<16x1xf32>
    %62 = arith.addf %58, %61 : vector<16x1xf32>
    %63 = math.rsqrt %62 : vector<16x1xf32>
    %64 = vector.broadcast %63 : vector<16x1xf32> to vector<16x32xf32>
    %65 = arith.mulf %60, %64 : vector<16x32xf32>
    %66 = vector.broadcast %16 : vector<1x32xf32> to vector<16x32xf32>
    %67 = arith.mulf %65, %66 : vector<16x32xf32>
    %68 = vector.broadcast %17 : vector<1x32xf32> to vector<16x32xf32>
    %69 = arith.addf %67, %68 : vector<16x32xf32>
    %cst_34 = arith.constant dense<0.000000e+00> : vector<16x64xf32>
    %70 = tpu.matmul %69, %9, %cst_34 {dimension_numbers = #tpu.dot_dimension_numbers<[1], [0], [0], [1], [0, 0, 1, 1], [], []>} : vector<16x32xf32>, vector<32x64xf32>, vector<16x64xf32> -> vector<16x64xf32>
    %71 = vector.broadcast %18 : vector<1x64xf32> to vector<16x64xf32>
    %72 = arith.addf %70, %71 : vector<16x64xf32>
    %cst_35 = arith.constant 5.000000e-01 : f32
    %73 = vector.broadcast %cst_35 : f32 to vector<16x64xf32>
    %74 = arith.mulf %73, %72 : vector<16x64xf32>
    %cst_36 = arith.constant 0.707106769 : f32
    %75 = vector.broadcast %cst_36 : f32 to vector<16x64xf32>
    %76 = arith.mulf %72, %75 : vector<16x64xf32>
    %77 = math.erf %76 : vector<16x64xf32>
    %cst_37 = arith.constant 1.000000e+00 : f32
    %78 = vector.broadcast %cst_37 : f32 to vector<16x64xf32>
    %79 = arith.addf %78, %77 : vector<16x64xf32>
    %80 = arith.mulf %74, %79 : vector<16x64xf32>
    %cst_38 = arith.constant dense<0.000000e+00> : vector<16x32xf32>
    %81 = tpu.matmul %80, %11, %cst_38 {dimension_numbers = #tpu.dot_dimension_numbers<[1], [0], [0], [1], [0, 0, 1, 1], [], []>} : vector<16x64xf32>, vector<64x32xf32>, vector<16x32xf32> -> vector<16x32xf32>
    %82 = vector.broadcast %19 : vector<1x32xf32> to vector<16x32xf32>
    %83 = arith.addf %81, %82 : vector<16x32xf32>
    %84 = arith.addf %83, %69 : vector<16x32xf32>
    %cst_39 = arith.constant dense<0.000000e+00> : vector<16xf32>
    %85 = vector.multi_reduction <add>, %84, %cst_39 [1] : vector<16x32xf32> to vector<16xf32>
    %86 = vector.shape_cast %85 : vector<16xf32> to vector<16x1xf32>
    %cst_40 = arith.constant 3.200000e+01 : f32
    %87 = vector.broadcast %cst_40 : f32 to vector<16x1xf32>
    %88 = arith.divf %86, %87 : vector<16x1xf32>
    %89 = vector.broadcast %88 : vector<16x1xf32> to vector<16x32xf32>
    %90 = arith.subf %84, %89 : vector<16x32xf32>
    %91 = arith.mulf %90, %90 : vector<16x32xf32>
    %cst_41 = arith.constant dense<0.000000e+00> : vector<16xf32>
    %92 = vector.multi_reduction <add>, %91, %cst_41 [1] : vector<16x32xf32> to vector<16xf32>
    %93 = vector.shape_cast %92 : vector<16xf32> to vector<16x1xf32>
    %cst_42 = arith.constant 3.200000e+01 : f32
    %94 = vector.broadcast %cst_42 : f32 to vector<16x1xf32>
    %95 = arith.divf %93, %94 : vector<16x1xf32>
    %96 = vector.broadcast %88 : vector<16x1xf32> to vector<16x32xf32>
    %97 = arith.subf %84, %96 : vector<16x32xf32>
    %cst_43 = arith.constant 9.99999996E-13 : f32
    %98 = vector.broadcast %cst_43 : f32 to vector<16x1xf32>
    %99 = arith.addf %95, %98 : vector<16x1xf32>
    %100 = math.rsqrt %99 : vector<16x1xf32>
    %101 = vector.broadcast %100 : vector<16x1xf32> to vector<16x32xf32>
    %102 = arith.mulf %97, %101 : vector<16x32xf32>
    %103 = vector.broadcast %20 : vector<1x32xf32> to vector<16x32xf32>
    %104 = arith.mulf %102, %103 : vector<16x32xf32>
    %105 = vector.broadcast %21 : vector<1x32xf32> to vector<16x32xf32>
    %106 = arith.addf %104, %105 : vector<16x32xf32>
    %c1 = arith.constant 1 : index
    %c0_44 = arith.constant 0 : index
    %c0_45 = arith.constant 0 : index
    %107 = vector.load %arg4[%c1, %c0_44, %c0_45] : memref<2x32x96xf32, #tpu.memory_space<vmem>>, vector<1x32x96xf32>
    %108 = vector.shape_cast %107 : vector<1x32x96xf32> to vector<32x96xf32>
    %c1_46 = arith.constant 1 : index
    %c0_47 = arith.constant 0 : index
    %c0_48 = arith.constant 0 : index
    %109 = vector.load %arg5[%c1_46, %c0_47, %c0_48] : memref<2x32x32xf32, #tpu.memory_space<vmem>>, vector<1x32x32xf32>
    %110 = vector.shape_cast %109 : vector<1x32x32xf32> to vector<32x32xf32>
    %c1_49 = arith.constant 1 : index
    %c0_50 = arith.constant 0 : index
    %c0_51 = arith.constant 0 : index
    %111 = vector.load %arg6[%c1_49, %c0_50, %c0_51] : memref<2x32x64xf32, #tpu.memory_space<vmem>>, vector<1x32x64xf32>
    %112 = vector.shape_cast %111 : vector<1x32x64xf32> to vector<32x64xf32>
    %c1_52 = arith.constant 1 : index
    %c0_53 = arith.constant 0 : index
    %c0_54 = arith.constant 0 : index
    %113 = vector.load %arg7[%c1_52, %c0_53, %c0_54] : memref<2x64x32xf32, #tpu.memory_space<vmem>>, vector<1x64x32xf32>
    %114 = vector.shape_cast %113 : vector<1x64x32xf32> to vector<64x32xf32>
    %c1_55 = arith.constant 1 : index
    %c0_56 = arith.constant 0 : index
    %c0_57 = arith.constant 0 : index
    %115 = vector.load %arg8[%c1_55, %c0_56, %c0_57] : memref<2x8x96xf32, #tpu.memory_space<vmem>>, vector<1x8x96xf32>
    %116 = vector.shape_cast %115 : vector<1x8x96xf32> to vector<8x96xf32>
    %117 = vector.extract_strided_slice %116 {offsets = [0, 0], sizes = [1, 96], strides = [1, 1]} : vector<8x96xf32> to vector<1x96xf32>
    %118 = vector.extract_strided_slice %116 {offsets = [1, 0], sizes = [1, 32], strides = [1, 1]} : vector<8x96xf32> to vector<1x32xf32>
    %119 = vector.extract_strided_slice %116 {offsets = [2, 0], sizes = [1, 32], strides = [1, 1]} : vector<8x96xf32> to vector<1x32xf32>
    %120 = vector.extract_strided_slice %116 {offsets = [3, 0], sizes = [1, 32], strides = [1, 1]} : vector<8x96xf32> to vector<1x32xf32>
    %121 = vector.extract_strided_slice %116 {offsets = [4, 0], sizes = [1, 64], strides = [1, 1]} : vector<8x96xf32> to vector<1x64xf32>
    %122 = vector.extract_strided_slice %116 {offsets = [5, 0], sizes = [1, 32], strides = [1, 1]} : vector<8x96xf32> to vector<1x32xf32>
    %123 = vector.extract_strided_slice %116 {offsets = [6, 0], sizes = [1, 32], strides = [1, 1]} : vector<8x96xf32> to vector<1x32xf32>
    %124 = vector.extract_strided_slice %116 {offsets = [7, 0], sizes = [1, 32], strides = [1, 1]} : vector<8x96xf32> to vector<1x32xf32>
    %cst_58 = arith.constant dense<0.000000e+00> : vector<16x96xf32>
    %125 = tpu.matmul %106, %108, %cst_58 {dimension_numbers = #tpu.dot_dimension_numbers<[1], [0], [0], [1], [0, 0, 1, 1], [], []>} : vector<16x32xf32>, vector<32x96xf32>, vector<16x96xf32> -> vector<16x96xf32>
    %126 = vector.broadcast %117 : vector<1x96xf32> to vector<16x96xf32>
    %127 = arith.addf %125, %126 : vector<16x96xf32>
    %128 = vector.extract_strided_slice %127 {offsets = [0, 0], sizes = [16, 32], strides = [1, 1]} : vector<16x96xf32> to vector<16x32xf32>
    %129 = vector.extract_strided_slice %127 {offsets = [0, 32], sizes = [16, 32], strides = [1, 1]} : vector<16x96xf32> to vector<16x32xf32>
    %130 = vector.extract_strided_slice %127 {offsets = [0, 64], sizes = [16, 32], strides = [1, 1]} : vector<16x96xf32> to vector<16x32xf32>
    %131 = tpu.concatenate %129, %129, %129, %129 in 0 : vector<16x32xf32>, vector<16x32xf32>, vector<16x32xf32>, vector<16x32xf32> -> vector<64x32xf32>
    %132 = arith.mulf %131, %2 : vector<64x32xf32>
    %133 = tpu.concatenate %130, %130, %130, %130 in 0 : vector<16x32xf32>, vector<16x32xf32>, vector<16x32xf32>, vector<16x32xf32> -> vector<64x32xf32>
    %134 = arith.mulf %133, %2 : vector<64x32xf32>
    %cst_59 = arith.constant dense<0.000000e+00> : vector<16x64xf32>
    %135 = tpu.matmul %128, %132, %cst_59 {dimension_numbers = #tpu.dot_dimension_numbers<[1], [1], [0], [0], [0, 0, 1, 0], [], []>} : vector<16x32xf32>, vector<64x32xf32>, vector<16x64xf32> -> vector<16x64xf32>
    %136 = arith.addf %135, %1 : vector<16x64xf32>
    %cst_60 = arith.constant dense<0xFF800000> : vector<16xf32>
    %137 = vector.multi_reduction <maximumf>, %136, %cst_60 [1] : vector<16x64xf32> to vector<16xf32>
    %138 = vector.shape_cast %137 : vector<16xf32> to vector<16x1xf32>
    %139 = vector.broadcast %138 : vector<16x1xf32> to vector<16x64xf32>
    %140 = arith.subf %136, %139 : vector<16x64xf32>
    %141 = math.exp %140 : vector<16x64xf32>
    %cst_61 = arith.constant dense<0.000000e+00> : vector<16x64xf32>
    %142 = tpu.matmul %141, %3, %cst_61 {dimension_numbers = #tpu.dot_dimension_numbers<[1], [0], [0], [1], [0, 0, 1, 1], [], []>} : vector<16x64xf32>, vector<64x64xf32>, vector<16x64xf32> -> vector<16x64xf32>
    %143 = tpu.reciprocal %142 {approx = true} : vector<16x64xf32> -> vector<16x64xf32>
    %144 = arith.mulf %141, %143 : vector<16x64xf32>
    %c0_62 = arith.constant 0 : index
    %c64 = arith.constant 64 : index
    %145 = vector.load %arg10[%c0_62, %c64] : memref<16x128xf32, #tpu.memory_space<vmem>>, vector<16x64xf32>
    tpu.vector_store %arg10[%c0_62, %c64], %144 {strides = array<i32>} : memref<16x128xf32, #tpu.memory_space<vmem>>, vector<16x64xf32>,
    %cst_63 = arith.constant dense<0.000000e+00> : vector<16x32xf32>
    %146 = tpu.matmul %144, %134, %cst_63 {dimension_numbers = #tpu.dot_dimension_numbers<[1], [0], [0], [1], [0, 0, 1, 1], [], []>} : vector<16x64xf32>, vector<64x32xf32>, vector<16x32xf32> -> vector<16x32xf32>
    %cst_64 = arith.constant dense<0.000000e+00> : vector<16x32xf32>
    %147 = tpu.matmul %146, %110, %cst_64 {dimension_numbers = #tpu.dot_dimension_numbers<[1], [0], [0], [1], [0, 0, 1, 1], [], []>} : vector<16x32xf32>, vector<32x32xf32>, vector<16x32xf32> -> vector<16x32xf32>
    %148 = vector.broadcast %118 : vector<1x32xf32> to vector<16x32xf32>
    %149 = arith.addf %147, %148 : vector<16x32xf32>
    %150 = arith.addf %106, %149 : vector<16x32xf32>
    %cst_65 = arith.constant dense<0.000000e+00> : vector<16xf32>
    %151 = vector.multi_reduction <add>, %150, %cst_65 [1] : vector<16x32xf32> to vector<16xf32>
    %152 = vector.shape_cast %151 : vector<16xf32> to vector<16x1xf32>
    %cst_66 = arith.constant 3.200000e+01 : f32
    %153 = vector.broadcast %cst_66 : f32 to vector<16x1xf32>
    %154 = arith.divf %152, %153 : vector<16x1xf32>
    %155 = vector.broadcast %154 : vector<16x1xf32> to vector<16x32xf32>
    %156 = arith.subf %150, %155 : vector<16x32xf32>
    %157 = arith.mulf %156, %156 : vector<16x32xf32>
    %cst_67 = arith.constant dense<0.000000e+00> : vector<16xf32>
    %158 = vector.multi_reduction <add>, %157, %cst_67 [1] : vector<16x32xf32> to vector<16xf32>
    %159 = vector.shape_cast %158 : vector<16xf32> to vector<16x1xf32>
    %cst_68 = arith.constant 3.200000e+01 : f32
    %160 = vector.broadcast %cst_68 : f32 to vector<16x1xf32>
    %161 = arith.divf %159, %160 : vector<16x1xf32>
    %162 = vector.broadcast %154 : vector<16x1xf32> to vector<16x32xf32>
    %163 = arith.subf %150, %162 : vector<16x32xf32>
    %cst_69 = arith.constant 9.99999996E-13 : f32
    %164 = vector.broadcast %cst_69 : f32 to vector<16x1xf32>
    %165 = arith.addf %161, %164 : vector<16x1xf32>
    %166 = math.rsqrt %165 : vector<16x1xf32>
    %167 = vector.broadcast %166 : vector<16x1xf32> to vector<16x32xf32>
    %168 = arith.mulf %163, %167 : vector<16x32xf32>
    %169 = vector.broadcast %119 : vector<1x32xf32> to vector<16x32xf32>
    %170 = arith.mulf %168, %169 : vector<16x32xf32>
    %171 = vector.broadcast %120 : vector<1x32xf32> to vector<16x32xf32>
    %172 = arith.addf %170, %171 : vector<16x32xf32>
    %cst_70 = arith.constant dense<0.000000e+00> : vector<16x64xf32>
    %173 = tpu.matmul %172, %112, %cst_70 {dimension_numbers = #tpu.dot_dimension_numbers<[1], [0], [0], [1], [0, 0, 1, 1], [], []>} : vector<16x32xf32>, vector<32x64xf32>, vector<16x64xf32> -> vector<16x64xf32>
    %174 = vector.broadcast %121 : vector<1x64xf32> to vector<16x64xf32>
    %175 = arith.addf %173, %174 : vector<16x64xf32>
    %cst_71 = arith.constant 5.000000e-01 : f32
    %176 = vector.broadcast %cst_71 : f32 to vector<16x64xf32>
    %177 = arith.mulf %176, %175 : vector<16x64xf32>
    %cst_72 = arith.constant 0.707106769 : f32
    %178 = vector.broadcast %cst_72 : f32 to vector<16x64xf32>
    %179 = arith.mulf %175, %178 : vector<16x64xf32>
    %180 = math.erf %179 : vector<16x64xf32>
    %cst_73 = arith.constant 1.000000e+00 : f32
    %181 = vector.broadcast %cst_73 : f32 to vector<16x64xf32>
    %182 = arith.addf %181, %180 : vector<16x64xf32>
    %183 = arith.mulf %177, %182 : vector<16x64xf32>
    %cst_74 = arith.constant dense<0.000000e+00> : vector<16x32xf32>
    %184 = tpu.matmul %183, %114, %cst_74 {dimension_numbers = #tpu.dot_dimension_numbers<[1], [0], [0], [1], [0, 0, 1, 1], [], []>} : vector<16x64xf32>, vector<64x32xf32>, vector<16x32xf32> -> vector<16x32xf32>
    %185 = vector.broadcast %122 : vector<1x32xf32> to vector<16x32xf32>
    %186 = arith.addf %184, %185 : vector<16x32xf32>
    %187 = arith.addf %186, %172 : vector<16x32xf32>
    %cst_75 = arith.constant dense<0.000000e+00> : vector<16xf32>
    %188 = vector.multi_reduction <add>, %187, %cst_75 [1] : vector<16x32xf32> to vector<16xf32>
    %189 = vector.shape_cast %188 : vector<16xf32> to vector<16x1xf32>
    %cst_76 = arith.constant 3.200000e+01 : f32
    %190 = vector.broadcast %cst_76 : f32 to vector<16x1xf32>
    %191 = arith.divf %189, %190 : vector<16x1xf32>
    %192 = vector.broadcast %191 : vector<16x1xf32> to vector<16x32xf32>
    %193 = arith.subf %187, %192 : vector<16x32xf32>
    %194 = arith.mulf %193, %193 : vector<16x32xf32>
    %cst_77 = arith.constant dense<0.000000e+00> : vector<16xf32>
    %195 = vector.multi_reduction <add>, %194, %cst_77 [1] : vector<16x32xf32> to vector<16xf32>
    %196 = vector.shape_cast %195 : vector<16xf32> to vector<16x1xf32>
    %cst_78 = arith.constant 3.200000e+01 : f32
    %197 = vector.broadcast %cst_78 : f32 to vector<16x1xf32>
    %198 = arith.divf %196, %197 : vector<16x1xf32>
    %199 = vector.broadcast %191 : vector<16x1xf32> to vector<16x32xf32>
    %200 = arith.subf %187, %199 : vector<16x32xf32>
    %cst_79 = arith.constant 9.99999996E-13 : f32
    %201 = vector.broadcast %cst_79 : f32 to vector<16x1xf32>
    %202 = arith.addf %198, %201 : vector<16x1xf32>
    %203 = math.rsqrt %202 : vector<16x1xf32>
    %204 = vector.broadcast %203 : vector<16x1xf32> to vector<16x32xf32>
    %205 = arith.mulf %200, %204 : vector<16x32xf32>
    %206 = vector.broadcast %123 : vector<1x32xf32> to vector<16x32xf32>
    %207 = arith.mulf %205, %206 : vector<16x32xf32>
    %208 = vector.broadcast %124 : vector<1x32xf32> to vector<16x32xf32>
    %209 = arith.addf %207, %208 : vector<16x32xf32>
    %c0_80 = arith.constant 0 : index
    %c0_81 = arith.constant 0 : index
    %210 = vector.load %arg9[%c0_80, %c0_81] : memref<16x32xf32, #tpu.memory_space<vmem>>, vector<16x32xf32>
    tpu.vector_store %arg9[%c0_80, %c0_81], %209 {strides = array<i32>} : memref<16x32xf32, #tpu.memory_space<vmem>>, vector<16x32xf32>,
    return
  }
}

</mosaic_0001>

<llo_original>
// kernel: tpu_custom_call.1
$region0: #{tpu_custom_call.1}
  #allocation0 [shape = 'u32[]', space=smem, size = 0x4, offset = 0x4, fixed_abs, tag = 'smem constant byte address 0x4 - core index']
  #allocation1 [shape = 'u32[144,128]{1,0:T(1,128)}', space=vmem, size = 0x12000, scoped, tag = 'internal scratch']
  %s0 = inlined_call_operand.vmem [shape: f32[16,32], index: 0, kind: input, shape index: {}]
  %s1 = inlined_call_operand.vmem [shape: f32[16,64], index: 1, kind: input, shape index: {}]
  %s2 = inlined_call_operand.vmem [shape: f32[64,32], index: 2, kind: input, shape index: {}]
  %s3 = inlined_call_operand.vmem [shape: f32[64,64], index: 3, kind: input, shape index: {}]
  %s4 = inlined_call_operand.vmem [shape: f32[2,32,96], index: 4, kind: input, shape index: {}]
  %s5 = inlined_call_operand.vmem [shape: f32[2,32,32], index: 5, kind: input, shape index: {}]
  %s6 = inlined_call_operand.vmem [shape: f32[2,32,64], index: 6, kind: input, shape index: {}]
  %s7 = inlined_call_operand.vmem [shape: f32[2,64,32], index: 7, kind: input, shape index: {}]
  %s8 = inlined_call_operand.hbm [shape: f32[2,8,96], index: 8, kind: input, shape index: {}]
  %s9 = inlined_call_operand.hbm [shape: f32[16,32], index: 9, kind: output, shape index: {0}]
  %s10 = inlined_call_operand.hbm [shape: f32[16,128], index: 10, kind: output, shape index: {1}]
  %11 = xla_tuple %s9, %s10
  %s12 = sld [smem:[#allocation0]]
  $region58: #{tpu_custom_call.1} parent=0
    _
  %s14 = ssub.s32 1, %s12
  %s15 = scalar_select 0, %s14, %s12
  $region1: #{tpu_custom_call.1} parent=0
    #allocation2 [shape = 'u8[8192]{0}', space=vmem, size = 0x2000, scoped, tag = 'input window, operand 8, single buffered']
    #allocation3 [shape = 's32[1]{0}', space=sflag, size = 0x4, scoped, tag = 'scoped memory for tpu_custom_call.1']
    #allocation4 [shape = 's32[1]{0}', space=sflag, size = 0x4, scoped, tag = 'scoped memory for tpu_custom_call.1']
    #allocation5 [shape = 'u8[8192]{0}', space=vmem, size = 0x2000, scoped, tag = 'output window, operand 0, single buffered']
    #allocation6 [shape = 'u8[8192]{0}', space=vmem, size = 0x2000, scoped, tag = 'output window, operand 1, single buffered']
    #allocation7 [shape = 's32[1]{0}', space=sflag, size = 0x4, scoped, tag = 'scoped memory for tpu_custom_call.1']
    %16 = vsyncpa [#allocation3], 0
    %17 = vsyncpa [#allocation4], 0
    %18 = vsyncpa [#allocation7], 0
    // Predicated region
    $region2: #{tpu_custom_call.1} parent=1 // pred_check
      _
    $region3: #{tpu_custom_call.1} parent=1 // pred_check_branch
      %20 = sbr.rel (0) target = $region5
    $region4: #{tpu_custom_call.1} parent=1 // pred_region
      _
    $region5: #{tpu_custom_call.1} parent=1 // pred_fallthru
      _
    // Predicated region
    $region6: #{tpu_custom_call.1} parent=1 // pred_check
      _
    $region7: #{tpu_custom_call.1} parent=1 // pred_check_branch
      %22 = sbr.rel (0) target = $region9
    $region8: #{tpu_custom_call.1} parent=1 // pred_region
      _
    $region9: #{tpu_custom_call.1} parent=1 // pred_fallthru
      _
    // Predicated region
    $region10: #{tpu_custom_call.1} parent=1 // pred_check
      _
    $region11: #{tpu_custom_call.1} parent=1 // pred_check_branch
      %24 = sbr.rel (0) target = $region13
    $region12: #{tpu_custom_call.1} parent=1 // pred_region
      _
    $region13: #{tpu_custom_call.1} parent=1 // pred_fallthru
      _
    // Predicated region
    $region14: #{tpu_custom_call.1} parent=1 // pred_check
      _
    $region15: #{tpu_custom_call.1} parent=1 // pred_check_branch
      %26 = sbr.rel (0) target = $region17
    $region16: #{tpu_custom_call.1} parent=1 // pred_region
      _
    $region17: #{tpu_custom_call.1} parent=1 // pred_fallthru
      _
    // Predicated region
    $region18: #{tpu_custom_call.1} parent=1 // pred_check
      _
    $region19: #{tpu_custom_call.1} parent=1 // pred_check_branch
      %28 = sbr.rel (0) target = $region21
    $region20: #{tpu_custom_call.1} parent=1 // pred_region
      _
    $region21: #{tpu_custom_call.1} parent=1 // pred_fallthru
      _
    // Predicated region
    $region22: #{tpu_custom_call.1} parent=1 // pred_check
      _
    $region23: #{tpu_custom_call.1} parent=1 // pred_check_branch
      %30 = sbr.rel (0) target = $region25
    $region24: #{tpu_custom_call.1} parent=1 // pred_region
      _
    $region25: #{tpu_custom_call.1} parent=1 // pred_fallthru
      _
    // Predicated region
    $region26: #{tpu_custom_call.1} parent=1 // pred_check
      _
    $region27: #{tpu_custom_call.1} parent=1 // pred_check_branch
      %32 = sbr.rel (0) target = $region29
    $region28: #{tpu_custom_call.1} parent=1 // pred_region
      _
    $region29: #{tpu_custom_call.1} parent=1 // pred_fallthru
      _
    // Predicated region
    $region30: #{tpu_custom_call.1} parent=1 // pred_check
      _
    $region31: #{tpu_custom_call.1} parent=1 // pred_check_branch
      %34 = sbr.rel (0) target = $region33
    $region32: #{tpu_custom_call.1} parent=1 // pred_region
      _
    $region33: #{tpu_custom_call.1} parent=1 // pred_fallthru
      _
    // Predicated region
    $region34: #{tpu_custom_call.1} parent=1 // pred_check
      _
    $region35: #{tpu_custom_call.1} parent=1 // pred_check_branch
      %36 = sbr.rel (0) target = $region37
    $region36: #{tpu_custom_call.1} parent=1 // pred_region
      %s38 = ssub.s32 256, 256
      %39 = vsyncadd [#allocation3], %s38
      %s40 = sshll.u32 [#allocation2], 4
      %s41 = int_to_ptr.vmem [resolvable:$true] %s40
      %46 = dma.hbm_to_vmem [thread:$0]  %s8, 256, %s41, [#allocation3], 128, 128, 8
    $region37: #{tpu_custom_call.1} parent=1 // pred_fallthru
      _
    // Predicated region
    $region38: #{tpu_custom_call.1} parent=1 // pred_check
      _
    $region39: #{tpu_custom_call.1} parent=1 // pred_check_branch
      %48 = sbr.rel (0) target = $region41
    $region40: #{tpu_custom_call.1} parent=1 // pred_region
      %49 = dma.done [#allocation3], 256
    $region41: #{tpu_custom_call.1} parent=1 // pred_fallthru
      _
    %v50 = vld [vmem:[%s0] sm:$0xff]
    %v51 = vld [vmem:[%s0 + $0x8] sm:$0xff]
    %v52 = vld [vmem:[%s1] sm:$0xff]
    %v53 = vld [vmem:[%s1 + $0x8] sm:$0xff]
    %v54 = vld [vmem:[%s2] sm:$0xff]
    %v55 = vld [vmem:[%s2 + $0x8] sm:$0xff]
    %v56 = vld [vmem:[%s2 + $0x10] sm:$0xff]
    %v57 = vld [vmem:[%s2 + $0x18] sm:$0xff]
    %v58 = vld [vmem:[%s2 + $0x20] sm:$0xff]
    %v59 = vld [vmem:[%s2 + $0x28] sm:$0xff]
    %v60 = vld [vmem:[%s2 + $0x30] sm:$0xff]
    %v61 = vld [vmem:[%s2 + $0x38] sm:$0xff]
    %v62 = vld [vmem:[%s3] sm:$0xff]
    %v63 = vld [vmem:[%s3 + $0x8] sm:$0xff]
    %v64 = vld [vmem:[%s3 + $0x10] sm:$0xff]
    %v65 = vld [vmem:[%s3 + $0x18] sm:$0xff]
    %v66 = vld [vmem:[%s3 + $0x20] sm:$0xff]
    %v67 = vld [vmem:[%s3 + $0x28] sm:$0xff]
    %v68 = vld [vmem:[%s3 + $0x30] sm:$0xff]
    %v69 = vld [vmem:[%s3 + $0x38] sm:$0xff]
    %v70 = vld [vmem:[%s4] sm:$0xff]
    %v71 = vld [vmem:[%s4 + $0x8] sm:$0xff]
    %v72 = vld [vmem:[%s4 + $0x10] sm:$0xff]
    %v73 = vld [vmem:[%s4 + $0x18] sm:$0xff]
    %v74 = vld [vmem:[%s5] sm:$0xff]
    %v75 = vld [vmem:[%s5 + $0x8] sm:$0xff]
    %v76 = vld [vmem:[%s5 + $0x10] sm:$0xff]
    %v77 = vld [vmem:[%s5 + $0x18] sm:$0xff]
    %v78 = vld [vmem:[%s6] sm:$0xff]
    %v79 = vld [vmem:[%s6 + $0x8] sm:$0xff]
    %v80 = vld [vmem:[%s6 + $0x10] sm:$0xff]
    %v81 = vld [vmem:[%s6 + $0x18] sm:$0xff]
    %v82 = vld [vmem:[%s7] sm:$0xff]
    %v83 = vld [vmem:[%s7 + $0x8] sm:$0xff]
    %v84 = vld [vmem:[%s7 + $0x10] sm:$0xff]
    %v85 = vld [vmem:[%s7 + $0x18] sm:$0xff]
    %v86 = vld [vmem:[%s7 + $0x20] sm:$0xff]
    %v87 = vld [vmem:[%s7 + $0x28] sm:$0xff]
    %v88 = vld [vmem:[%s7 + $0x30] sm:$0xff]
    %v89 = vld [vmem:[%s7 + $0x38] sm:$0xff]
    %v90 = vld [vmem:[#allocation2] sm:$0xff]
    %v91 = vlaneseq
    %v92 = vshrl.u32 %v91, 7
    %v93 = vsub.s32 0, %v92
    %v94 = vrot.slane %v90, %v93
    %vm95 = vcmask 261120
    %v97 = vsel %vm95, %v50, 0
    %v100 = vsel %vm95, %v51, 0
    %102 = vmatprep.subr.mxu0 0.0
    %103 = vmatpush1.msra.mxu0 0.0
    %104 = vmatprep.subr.mxu0 0.0
    %105 = vmatpush1.msra.mxu0 0.0
    %106 = vmatprep.subr.mxu0 0.0
    %107 = vmatpush1.msra.mxu0 0.0
    %108 = vmatprep.subr.mxu0 0.0
    %109 = vmatpush1.msra.mxu0 0.0
    %110 = vmatprep.subr.mxu0 0.0
    %111 = vmatpush1.msra.mxu0 0.0
    %112 = vmatprep.subr.mxu0 0.0
    %113 = vmatpush1.msra.mxu0 0.0
    %114 = vmatprep.subr.mxu0 0.0
    %115 = vmatpush1.msra.mxu0 0.0
    %116 = vmatprep.subr.mxu0 0.0
    %117 = vmatpush1.msra.mxu0 0.0
    %118 = vmatprep.subr.mxu0 0.0
    %119 = vmatpush1.msra.mxu0 0.0
    %120 = vmatprep.subr.mxu0 0.0
    %121 = vmatpush1.msra.mxu0 0.0
    %122 = vmatprep.subr.mxu0 0.0
    %123 = vmatpush1.msra.mxu0 0.0
    %124 = vmatprep.subr.mxu0 0.0
    %125 = vmatpush1.msra.mxu0 0.0
    %126 = vmatprep.subr.mxu0 0.0
    %127 = vmatpush1.msra.mxu0 %v73
    %128 = vmatprep.subr.mxu0 0.0
    %129 = vmatpush1.msra.mxu0 %v72
    %130 = vmatprep.subr.mxu0 0.0
    %131 = vmatpush1.msra.mxu0 %v71
    %132 = vmatprep.subr.mxu0 0.0
    %133 = vmatpush1.msra.mxu0 %v70
    %134 = vmatprep.subr.mxu0 0.0
    %135 = vmatpush2.msra.mxu0 0.0
    %136 = vmatprep.subr.mxu0 0.0
    %137 = vmatpush2.msra.mxu0 0.0
    %138 = vmatprep.subr.mxu0 0.0
    %139 = vmatpush2.msra.mxu0 0.0
    %140 = vmatprep.subr.mxu0 0.0
    %141 = vmatpush2.msra.mxu0 0.0
    %142 = vmatprep.subr.mxu0 0.0
    %143 = vmatpush2.msra.mxu0 0.0
    %144 = vmatprep.subr.mxu0 0.0
    %145 = vmatpush2.msra.mxu0 0.0
    %146 = vmatprep.subr.mxu0 0.0
    %147 = vmatpush2.msra.mxu0 0.0
    %148 = vmatprep.subr.mxu0 0.0
    %149 = vmatpush2.msra.mxu0 0.0
    %150 = vmatprep.subr.mxu0 0.0
    %151 = vmatpush2.msra.mxu0 0.0
    %152 = vmatprep.subr.mxu0 0.0
    %153 = vmatpush2.msra.mxu0 0.0
    %154 = vmatprep.subr.mxu0 0.0
    %155 = vmatpush2.msra.mxu0 0.0
    %156 = vmatprep.subr.mxu0 0.0
    %157 = vmatpush2.msra.mxu0 0.0
    %158 = vmatprep.subr.mxu0 0.0
    %159 = vmatpush2.msra.mxu0 0.0
    %160 = vmatprep.subr.mxu0 0.0
    %161 = vmatpush2.msra.mxu0 0.0
    %162 = vmatprep.subr.mxu0 0.0
    %163 = vmatpush2.msra.mxu0 0.0
    %164 = vmatprep.subr.mxu0 0.0
    %165 = vmatpush2.msra.mxu0 0.0
    %166 = vmatprep.mubr.f32.mxu0 0.0
    %167 = vmatmul.mubr.f32.gmra.mxu0 %v97
    %v168 = vpop.f32.mrf.mxu0
    %v169 = vadd.f32 %v94, %v168
    %v170 = vpop.f32.mrf.mxu0
    %171 = vmatprep.mubr.f32.mxu0 0.0
    %172 = vmatmul.mubr.f32.gmra.mxu0 %v100
    %v173 = vpop.f32.mrf.mxu0
    %v174 = vadd.f32 %v94, %v173
    %v175 = vpop.f32.mrf.mxu0
    %176 = vdwg.mxu0
    %185 = vrot.lane.b32.xlu0 %v54, 32
    %v186 = vpop.permute.xlu0 %185
    %187 = vrot.lane.b32.xlu0 %v55, 32
    %v188 = vpop.permute.xlu0 %187
    %189 = vrot.lane.b32.xlu0 %v56, 32
    %v190 = vpop.permute.xlu0 %189
    %191 = vrot.lane.b32.xlu0 %v57, 32
    %v192 = vpop.permute.xlu0 %191
    %193 = vrot.lane.b32.xlu0 %v58, 32
    %v194 = vpop.permute.xlu0 %193
    %195 = vrot.lane.b32.xlu0 %v59, 32
    %v196 = vpop.permute.xlu0 %195
    %197 = vrot.lane.b32.xlu0 %v60, 32
    %v198 = vpop.permute.xlu0 %197
    %199 = vrot.lane.b32.xlu0 %v61, 32
    %v200 = vpop.permute.xlu0 %199
    %v209 = vmul.f32 %v169, %v186
    %v210 = vmul.f32 %v174, %v188
    %v211 = vmul.f32 %v169, %v190
    %v212 = vmul.f32 %v174, %v192
    %v213 = vmul.f32 %v169, %v194
    %v214 = vmul.f32 %v174, %v196
    %v215 = vmul.f32 %v169, %v198
    %v216 = vmul.f32 %v174, %v200
    %217 = vrot.lane.b32.xlu0 %v54, 64
    %v218 = vpop.permute.xlu0 %217
    %219 = vrot.lane.b32.xlu0 %v55, 64
    %v220 = vpop.permute.xlu0 %219
    %221 = vrot.lane.b32.xlu0 %v56, 64
    %v222 = vpop.permute.xlu0 %221
    %223 = vrot.lane.b32.xlu0 %v57, 64
    %v224 = vpop.permute.xlu0 %223
    %225 = vrot.lane.b32.xlu0 %v58, 64
    %v226 = vpop.permute.xlu0 %225
    %227 = vrot.lane.b32.xlu0 %v59, 64
    %v228 = vpop.permute.xlu0 %227
    %229 = vrot.lane.b32.xlu0 %v60, 64
    %v230 = vpop.permute.xlu0 %229
    %231 = vrot.lane.b32.xlu0 %v61, 64
    %v232 = vpop.permute.xlu0 %231
    %v241 = vmul.f32 %v169, %v218
    %v242 = vmul.f32 %v174, %v220
    %v243 = vmul.f32 %v169, %v222
    %v244 = vmul.f32 %v174, %v224
    %v245 = vmul.f32 %v169, %v226
    %v246 = vmul.f32 %v174, %v228
    %v247 = vmul.f32 %v169, %v230
    %v248 = vmul.f32 %v174, %v232
    %257 = vrot.lane.b32.xlu0 %v209, 96
    %v258 = vpop.permute.xlu0 %257
    %259 = vrot.lane.b32.xlu0 %v210, 96
    %v260 = vpop.permute.xlu0 %259
    %261 = vrot.lane.b32.xlu0 %v211, 96
    %v262 = vpop.permute.xlu0 %261
    %263 = vrot.lane.b32.xlu0 %v212, 96
    %v264 = vpop.permute.xlu0 %263
    %265 = vrot.lane.b32.xlu0 %v213, 96
    %v266 = vpop.permute.xlu0 %265
    %267 = vrot.lane.b32.xlu0 %v214, 96
    %v268 = vpop.permute.xlu0 %267
    %269 = vrot.lane.b32.xlu0 %v215, 96
    %v270 = vpop.permute.xlu0 %269
    %271 = vrot.lane.b32.xlu0 %v216, 96
    %v272 = vpop.permute.xlu0 %271
    %v274 = vsel %vm95, %v169, 0
    %v277 = vsel %vm95, %v174, 0
    %v279 = vsel %vm95, %v258, 0
    %v281 = vsel %vm95, %v260, 0
    %v283 = vsel %vm95, %v262, 0
    %v285 = vsel %vm95, %v264, 0
    %v287 = vsel %vm95, %v266, 0
    %v289 = vsel %vm95, %v268, 0
    %v291 = vsel %vm95, %v270, 0
    %v293 = vsel %vm95, %v272, 0
    %295 = vmatprep.subr.mxu0 0.0
    %296 = vmatpush1.xpose.msra.mxu0 0.0
    %297 = vmatprep.subr.mxu0 0.0
    %298 = vmatpush1.xpose.msra.mxu0 0.0
    %299 = vmatprep.subr.mxu0 0.0
    %300 = vmatpush1.xpose.msra.mxu0 0.0
    %301 = vmatprep.subr.mxu0 0.0
    %302 = vmatpush1.xpose.msra.mxu0 0.0
    %303 = vmatprep.subr.mxu0 0.0
    %304 = vmatpush1.xpose.msra.mxu0 0.0
    %305 = vmatprep.subr.mxu0 0.0
    %306 = vmatpush1.xpose.msra.mxu0 0.0
    %307 = vmatprep.subr.mxu0 0.0
    %308 = vmatpush1.xpose.msra.mxu0 0.0
    %309 = vmatprep.subr.mxu0 0.0
    %310 = vmatpush1.xpose.msra.mxu0 0.0
    %311 = vmatprep.subr.mxu0 0.0
    %312 = vmatpush1.xpose.msra.mxu0 %v293
    %313 = vmatprep.subr.mxu0 0.0
    %314 = vmatpush1.xpose.msra.mxu0 %v291
    %315 = vmatprep.subr.mxu0 0.0
    %316 = vmatpush1.xpose.msra.mxu0 %v289
    %317 = vmatprep.subr.mxu0 0.0
    %318 = vmatpush1.xpose.msra.mxu0 %v287
    %319 = vmatprep.subr.mxu0 0.0
    %320 = vmatpush1.xpose.msra.mxu0 %v285
    %321 = vmatprep.subr.mxu0 0.0
    %322 = vmatpush1.xpose.msra.mxu0 %v283
    %323 = vmatprep.subr.mxu0 0.0
    %324 = vmatpush1.xpose.msra.mxu0 %v281
    %325 = vmatprep.subr.mxu0 0.0
    %326 = vmatpush1.xpose.msra.mxu0 %v279
    %327 = vmatprep.subr.mxu0 0.0
    %328 = vmatpush2.xpose.msra.mxu0 0.0
    %329 = vmatprep.subr.mxu0 0.0
    %330 = vmatpush2.xpose.msra.mxu0 0.0
    %331 = vmatprep.subr.mxu0 0.0
    %332 = vmatpush2.xpose.msra.mxu0 0.0
    %333 = vmatprep.subr.mxu0 0.0
    %334 = vmatpush2.xpose.msra.mxu0 0.0
    %335 = vmatprep.subr.mxu0 0.0
    %336 = vmatpush2.xpose.msra.mxu0 0.0
    %337 = vmatprep.subr.mxu0 0.0
    %338 = vmatpush2.xpose.msra.mxu0 0.0
    %339 = vmatprep.subr.mxu0 0.0
    %340 = vmatpush2.xpose.msra.mxu0 0.0
    %341 = vmatprep.subr.mxu0 0.0
    %342 = vmatpush2.xpose.msra.mxu0 0.0
    %343 = vmatprep.subr.mxu0 0.0
    %344 = vmatpush2.xpose.msra.mxu0 0.0
    %345 = vmatprep.subr.mxu0 0.0
    %346 = vmatpush2.xpose.msra.mxu0 0.0
    %347 = vmatprep.subr.mxu0 0.0
    %348 = vmatpush2.xpose.msra.mxu0 0.0
    %349 = vmatprep.subr.mxu0 0.0
    %350 = vmatpush2.xpose.msra.mxu0 0.0
    %351 = vmatprep.subr.mxu0 0.0
    %352 = vmatpush2.xpose.msra.mxu0 0.0
    %353 = vmatprep.subr.mxu0 0.0
    %354 = vmatpush2.xpose.msra.mxu0 0.0
    %355 = vmatprep.subr.mxu0 0.0
    %356 = vmatpush2.xpose.msra.mxu0 0.0
    %357 = vmatprep.subr.mxu0 0.0
    %358 = vmatpush2.xpose.msra.mxu0 0.0
    %359 = vmatprep.mubr.f32.mxu0 0.0
    %360 = vmatmul.mubr.f32.gmra.mxu0 %v274
    %v361 = vpop.f32.mrf.mxu0
    %v362 = vadd.f32 %v52, %v361
    %v363 = vpop.f32.mrf.mxu0
    %364 = vmatprep.mubr.f32.mxu0 0.0
    %365 = vmatmul.mubr.f32.gmra.mxu0 %v277
    %v366 = vpop.f32.mrf.mxu0
    %v367 = vadd.f32 %v53, %v366
    %v368 = vpop.f32.mrf.mxu0
    %369 = vdwg.mxu0
    %vm370 = vcmask 523264
    %v371 = vsel %vm370, %v362, -inf
    %372 = vmax.xlane.f32.xlu0 %v371
    %v373 = vpop.xlane.xlu0 %372
    %v374 = vsel %vm370, %v367, -inf
    %375 = vmax.xlane.f32.xlu0 %v374
    %v376 = vpop.xlane.xlu0 %375
    %v377 = vsub.f32 %v362, %v373
    %v378 = vsub.f32 %v367, %v376
    %v379 = vmul.f32 %v377, 1.442695
    %v380 = vpow.pop %v379
    %v381 = vmul.f32 %v378, 1.442695
    %v382 = vpow.pop %v381
    %v384 = vsel %vm370, %v380, 0
    %v387 = vsel %vm370, %v382, 0
    %389 = vmatprep.subr.mxu0 0.0
    %390 = vmatpush1.msra.mxu0 0.0
    %391 = vmatprep.subr.mxu0 0.0
    %392 = vmatpush1.msra.mxu0 0.0
    %393 = vmatprep.subr.mxu0 0.0
    %394 = vmatpush1.msra.mxu0 0.0
    %395 = vmatprep.subr.mxu0 0.0
    %396 = vmatpush1.msra.mxu0 0.0
    %397 = vmatprep.subr.mxu0 0.0
    %398 = vmatpush1.msra.mxu0 0.0
    %399 = vmatprep.subr.mxu0 0.0
    %400 = vmatpush1.msra.mxu0 0.0
    %401 = vmatprep.subr.mxu0 0.0
    %402 = vmatpush1.msra.mxu0 0.0
    %403 = vmatprep.subr.mxu0 0.0
    %404 = vmatpush1.msra.mxu0 0.0
    %405 = vmatprep.subr.mxu0 0.0
    %406 = vmatpush1.msra.mxu0 %v69
    %407 = vmatprep.subr.mxu0 0.0
    %408 = vmatpush1.msra.mxu0 %v68
    %409 = vmatprep.subr.mxu0 0.0
    %410 = vmatpush1.msra.mxu0 %v67
    %411 = vmatprep.subr.mxu0 0.0
    %412 = vmatpush1.msra.mxu0 %v66
    %413 = vmatprep.subr.mxu0 0.0
    %414 = vmatpush1.msra.mxu0 %v65
    %415 = vmatprep.subr.mxu0 0.0
    %416 = vmatpush1.msra.mxu0 %v64
    %417 = vmatprep.subr.mxu0 0.0
    %418 = vmatpush1.msra.mxu0 %v63
    %419 = vmatprep.subr.mxu0 0.0
    %420 = vmatpush1.msra.mxu0 %v62
    %421 = vmatprep.subr.mxu0 0.0
    %422 = vmatpush2.msra.mxu0 0.0
    %423 = vmatprep.subr.mxu0 0.0
    %424 = vmatpush2.msra.mxu0 0.0
    %425 = vmatprep.subr.mxu0 0.0
    %426 = vmatpush2.msra.mxu0 0.0
    %427 = vmatprep.subr.mxu0 0.0
    %428 = vmatpush2.msra.mxu0 0.0
    %429 = vmatprep.subr.mxu0 0.0
    %430 = vmatpush2.msra.mxu0 0.0
    %431 = vmatprep.subr.mxu0 0.0
    %432 = vmatpush2.msra.mxu0 0.0
    %433 = vmatprep.subr.mxu0 0.0
    %434 = vmatpush2.msra.mxu0 0.0
    %435 = vmatprep.subr.mxu0 0.0
    %436 = vmatpush2.msra.mxu0 0.0
    %437 = vmatprep.subr.mxu0 0.0
    %438 = vmatpush2.msra.mxu0 0.0
    %439 = vmatprep.subr.mxu0 0.0
    %440 = vmatpush2.msra.mxu0 0.0
    %441 = vmatprep.subr.mxu0 0.0
    %442 = vmatpush2.msra.mxu0 0.0
    %443 = vmatprep.subr.mxu0 0.0
    %444 = vmatpush2.msra.mxu0 0.0
    %445 = vmatprep.subr.mxu0 0.0
    %446 = vmatpush2.msra.mxu0 0.0
    %447 = vmatprep.subr.mxu0 0.0
    %448 = vmatpush2.msra.mxu0 0.0
    %449 = vmatprep.subr.mxu0 0.0
    %450 = vmatpush2.msra.mxu0 0.0
    %451 = vmatprep.subr.mxu0 0.0
    %452 = vmatpush2.msra.mxu0 0.0
    %453 = vmatprep.mubr.f32.mxu0 0.0
    %454 = vmatmul.mubr.f32.gmra.mxu0 %v384
    %v455 = vpop.f32.mrf.mxu0
    %v456 = vadd.f32 0.0, %v455
    %v457 = vpop.f32.mrf.mxu0
    %458 = vmatprep.mubr.f32.mxu0 0.0
    %459 = vmatmul.mubr.f32.gmra.mxu0 %v387
    %v460 = vpop.f32.mrf.mxu0
    %v461 = vadd.f32 0.0, %v460
    %v462 = vpop.f32.mrf.mxu0
    %463 = vdwg.mxu0
    %v464 = vrcp.pop %v456
    %v465 = vrcp.pop %v461
    %v466 = vmul.f32 %v380, %v464
    %v467 = vmul.f32 %v382, %v465
    %468 = vst.msk [vmem:[#allocation6] sm:$0xff] %vm370, %v466
    %469 = vst.msk [vmem:[#allocation6 + $0x8] sm:$0xff] %vm370, %v467
    %478 = vrot.lane.b32.xlu0 %v241, 64
    %v479 = vpop.permute.xlu0 %478
    %480 = vrot.lane.b32.xlu0 %v242, 64
    %v481 = vpop.permute.xlu0 %480
    %482 = vrot.lane.b32.xlu0 %v243, 64
    %v483 = vpop.permute.xlu0 %482
    %484 = vrot.lane.b32.xlu0 %v244, 64
    %v485 = vpop.permute.xlu0 %484
    %486 = vrot.lane.b32.xlu0 %v245, 64
    %v487 = vpop.permute.xlu0 %486
    %488 = vrot.lane.b32.xlu0 %v246, 64
    %v489 = vpop.permute.xlu0 %488
    %490 = vrot.lane.b32.xlu0 %v247, 64
    %v491 = vpop.permute.xlu0 %490
    %492 = vrot.lane.b32.xlu0 %v248, 64
    %v493 = vpop.permute.xlu0 %492
    %v503 = vsel %vm370, %v466, 0
    %v506 = vsel %vm370, %v467, 0
    %508 = vmatprep.subr.mxu0 0.0
    %509 = vmatpush1.msra.mxu0 0.0
    %510 = vmatprep.subr.mxu0 0.0
    %511 = vmatpush1.msra.mxu0 0.0
    %512 = vmatprep.subr.mxu0 0.0
    %513 = vmatpush1.msra.mxu0 0.0
    %514 = vmatprep.subr.mxu0 0.0
    %515 = vmatpush1.msra.mxu0 0.0
    %516 = vmatprep.subr.mxu0 0.0
    %517 = vmatpush1.msra.mxu0 0.0
    %518 = vmatprep.subr.mxu0 0.0
    %519 = vmatpush1.msra.mxu0 0.0
    %520 = vmatprep.subr.mxu0 0.0
    %521 = vmatpush1.msra.mxu0 0.0
    %522 = vmatprep.subr.mxu0 0.0
    %523 = vmatpush1.msra.mxu0 0.0
    %524 = vmatprep.subr.mxu0 0.0
    %525 = vmatpush1.msra.mxu0 %v493
    %526 = vmatprep.subr.mxu0 0.0
    %527 = vmatpush1.msra.mxu0 %v491
    %528 = vmatprep.subr.mxu0 0.0
    %529 = vmatpush1.msra.mxu0 %v489
    %530 = vmatprep.subr.mxu0 0.0
    %531 = vmatpush1.msra.mxu0 %v487
    %532 = vmatprep.subr.mxu0 0.0
    %533 = vmatpush1.msra.mxu0 %v485
    %534 = vmatprep.subr.mxu0 0.0
    %535 = vmatpush1.msra.mxu0 %v483
    %536 = vmatprep.subr.mxu0 0.0
    %537 = vmatpush1.msra.mxu0 %v481
    %538 = vmatprep.subr.mxu0 0.0
    %539 = vmatpush1.msra.mxu0 %v479
    %540 = vmatprep.subr.mxu0 0.0
    %541 = vmatpush2.msra.mxu0 0.0
    %542 = vmatprep.subr.mxu0 0.0
    %543 = vmatpush2.msra.mxu0 0.0
    %544 = vmatprep.subr.mxu0 0.0
    %545 = vmatpush2.msra.mxu0 0.0
    %546 = vmatprep.subr.mxu0 0.0
    %547 = vmatpush2.msra.mxu0 0.0
    %548 = vmatprep.subr.mxu0 0.0
    %549 = vmatpush2.msra.mxu0 0.0
    %550 = vmatprep.subr.mxu0 0.0
    %551 = vmatpush2.msra.mxu0 0.0
    %552 = vmatprep.subr.mxu0 0.0
    %553 = vmatpush2.msra.mxu0 0.0
    %554 = vmatprep.subr.mxu0 0.0
    %555 = vmatpush2.msra.mxu0 0.0
    %556 = vmatprep.subr.mxu0 0.0
    %557 = vmatpush2.msra.mxu0 0.0
    %558 = vmatprep.subr.mxu0 0.0
    %559 = vmatpush2.msra.mxu0 0.0
    %560 = vmatprep.subr.mxu0 0.0
    %561 = vmatpush2.msra.mxu0 0.0
    %562 = vmatprep.subr.mxu0 0.0
    %563 = vmatpush2.msra.mxu0 0.0
    %564 = vmatprep.subr.mxu0 0.0
    %565 = vmatpush2.msra.mxu0 0.0
    %566 = vmatprep.subr.mxu0 0.0
    %567 = vmatpush2.msra.mxu0 0.0
    %568 = vmatprep.subr.mxu0 0.0
    %569 = vmatpush2.msra.mxu0 0.0
    %570 = vmatprep.subr.mxu0 0.0
    %571 = vmatpush2.msra.mxu0 0.0
    %572 = vmatprep.mubr.f32.mxu0 0.0
    %573 = vmatmul.mubr.f32.gmra.mxu0 %v503
    %v574 = vpop.f32.mrf.mxu0
    %v575 = vadd.f32 0.0, %v574
    %v576 = vpop.f32.mrf.mxu0
    %577 = vmatprep.mubr.f32.mxu0 0.0
    %578 = vmatmul.mubr.f32.gmra.mxu0 %v506
    %v579 = vpop.f32.mrf.mxu0
    %v580 = vadd.f32 0.0, %v579
    %v581 = vpop.f32.mrf.mxu0
    %582 = vdwg.mxu0
    %v583 = vlaneseq
    %v584 = vshrl.u32 %v583, 7
    %v585 = vsub.s32 1, %v584
    %v586 = vrot.slane %v90, %v585
    %v588 = vsel %vm95, %v575, 0
    %v591 = vsel %vm95, %v580, 0
    %593 = vmatprep.subr.mxu0 0.0
    %594 = vmatpush1.msra.mxu0 0.0
    %595 = vmatprep.subr.mxu0 0.0
    %596 = vmatpush1.msra.mxu0 0.0
    %597 = vmatprep.subr.mxu0 0.0
    %598 = vmatpush1.msra.mxu0 0.0
    %599 = vmatprep.subr.mxu0 0.0
    %600 = vmatpush1.msra.mxu0 0.0
    %601 = vmatprep.subr.mxu0 0.0
    %602 = vmatpush1.msra.mxu0 0.0
    %603 = vmatprep.subr.mxu0 0.0
    %604 = vmatpush1.msra.mxu0 0.0
    %605 = vmatprep.subr.mxu0 0.0
    %606 = vmatpush1.msra.mxu0 0.0
    %607 = vmatprep.subr.mxu0 0.0
    %608 = vmatpush1.msra.mxu0 0.0
    %609 = vmatprep.subr.mxu0 0.0
    %610 = vmatpush1.msra.mxu0 0.0
    %611 = vmatprep.subr.mxu0 0.0
    %612 = vmatpush1.msra.mxu0 0.0
    %613 = vmatprep.subr.mxu0 0.0
    %614 = vmatpush1.msra.mxu0 0.0
    %615 = vmatprep.subr.mxu0 0.0
    %616 = vmatpush1.msra.mxu0 0.0
    %617 = vmatprep.subr.mxu0 0.0
    %618 = vmatpush1.msra.mxu0 %v77
    %619 = vmatprep.subr.mxu0 0.0
    %620 = vmatpush1.msra.mxu0 %v76
    %621 = vmatprep.subr.mxu0 0.0
    %622 = vmatpush1.msra.mxu0 %v75
    %623 = vmatprep.subr.mxu0 0.0
    %624 = vmatpush1.msra.mxu0 %v74
    %625 = vmatprep.subr.mxu0 0.0
    %626 = vmatpush2.msra.mxu0 0.0
    %627 = vmatprep.subr.mxu0 0.0
    %628 = vmatpush2.msra.mxu0 0.0
    %629 = vmatprep.subr.mxu0 0.0
    %630 = vmatpush2.msra.mxu0 0.0
    %631 = vmatprep.subr.mxu0 0.0
    %632 = vmatpush2.msra.mxu0 0.0
    %633 = vmatprep.subr.mxu0 0.0
    %634 = vmatpush2.msra.mxu0 0.0
    %635 = vmatprep.subr.mxu0 0.0
    %636 = vmatpush2.msra.mxu0 0.0
    %637 = vmatprep.subr.mxu0 0.0
    %638 = vmatpush2.msra.mxu0 0.0
    %639 = vmatprep.subr.mxu0 0.0
    %640 = vmatpush2.msra.mxu0 0.0
    %641 = vmatprep.subr.mxu0 0.0
    %642 = vmatpush2.msra.mxu0 0.0
    %643 = vmatprep.subr.mxu0 0.0
    %644 = vmatpush2.msra.mxu0 0.0
    %645 = vmatprep.subr.mxu0 0.0
    %646 = vmatpush2.msra.mxu0 0.0
    %647 = vmatprep.subr.mxu0 0.0
    %648 = vmatpush2.msra.mxu0 0.0
    %649 = vmatprep.subr.mxu0 0.0
    %650 = vmatpush2.msra.mxu0 0.0
    %651 = vmatprep.subr.mxu0 0.0
    %652 = vmatpush2.msra.mxu0 0.0
    %653 = vmatprep.subr.mxu0 0.0
    %654 = vmatpush2.msra.mxu0 0.0
    %655 = vmatprep.subr.mxu0 0.0
    %656 = vmatpush2.msra.mxu0 0.0
    %657 = vmatprep.mubr.f32.mxu0 0.0
    %658 = vmatmul.mubr.f32.gmra.mxu0 %v588
    %v659 = vpop.f32.mrf.mxu0
    %v660 = vadd.f32 %v586, %v659
    %v661 = vpop.f32.mrf.mxu0
    %662 = vmatprep.mubr.f32.mxu0 0.0
    %663 = vmatmul.mubr.f32.gmra.mxu0 %v591
    %v664 = vpop.f32.mrf.mxu0
    %v665 = vadd.f32 %v586, %v664
    %v666 = vpop.f32.mrf.mxu0
    %667 = vdwg.mxu0
    %v668 = vadd.f32 %v50, %v660
    %v669 = vadd.f32 %v51, %v665
    %v670 = vsel %vm95, %v668, 0.0
    %671 = vadd.xlane.f32.xlu0 %v670
    %v672 = vpop.xlane.xlu0 %671
    %v673 = vsel %vm95, %v669, 0.0
    %674 = vadd.xlane.f32.xlu0 %v673
    %v675 = vpop.xlane.xlu0 %674
    %v676 = vrcp.pop 32.0
    %v677 = vmul.f32 %v672, %v676
    %v678 = vmul.f32 %v675, %v676
    %v679 = vsub.f32 %v668, %v677
    %v680 = vsub.f32 %v669, %v678
    %v681 = vmul.f32 %v679, %v679
    %v682 = vmul.f32 %v680, %v680
    %v683 = vsel %vm95, %v681, 0.0
    %684 = vadd.xlane.f32.xlu0 %v683
    %v685 = vpop.xlane.xlu0 %684
    %v686 = vsel %vm95, %v682, 0.0
    %687 = vadd.xlane.f32.xlu0 %v686
    %v688 = vpop.xlane.xlu0 %687
    %v689 = vmul.f32 %v685, %v676
    %v690 = vmul.f32 %v688, %v676
    %v691 = vadd.f32 %v689, 1e-12
    %v692 = vadd.f32 %v690, 1e-12
    %v693 = vrsqrt.pop %v691
    %v694 = vrsqrt.pop %v692
    %v695 = vmul.f32 %v679, %v693
    %v696 = vmul.f32 %v680, %v694
    %v697 = vlaneseq
    %v698 = vshrl.u32 %v697, 7
    %v699 = vsub.s32 2, %v698
    %v700 = vrot.slane %v90, %v699
    %v701 = vmul.f32 %v695, %v700
    %v702 = vmul.f32 %v696, %v700
    %v703 = vlaneseq
    %v704 = vshrl.u32 %v703, 7
    %v705 = vsub.s32 3, %v704
    %v706 = vrot.slane %v90, %v705
    %v707 = vadd.f32 %v701, %v706
    %v708 = vadd.f32 %v702, %v706
    %v709 = vlaneseq
    %v710 = vshrl.u32 %v709, 7
    %v711 = vsub.s32 4, %v710
    %v712 = vrot.slane %v90, %v711
    %v714 = vsel %vm95, %v707, 0
    %v717 = vsel %vm95, %v708, 0
    %719 = vmatprep.subr.mxu0 0.0
    %720 = vmatpush1.msra.mxu0 0.0
    %721 = vmatprep.subr.mxu0 0.0
    %722 = vmatpush1.msra.mxu0 0.0
    %723 = vmatprep.subr.mxu0 0.0
    %724 = vmatpush1.msra.mxu0 0.0
    %725 = vmatprep.subr.mxu0 0.0
    %726 = vmatpush1.msra.mxu0 0.0
    %727 = vmatprep.subr.mxu0 0.0
    %728 = vmatpush1.msra.mxu0 0.0
    %729 = vmatprep.subr.mxu0 0.0
    %730 = vmatpush1.msra.mxu0 0.0
    %731 = vmatprep.subr.mxu0 0.0
    %732 = vmatpush1.msra.mxu0 0.0
    %733 = vmatprep.subr.mxu0 0.0
    %734 = vmatpush1.msra.mxu0 0.0
    %735 = vmatprep.subr.mxu0 0.0
    %736 = vmatpush1.msra.mxu0 0.0
    %737 = vmatprep.subr.mxu0 0.0
    %738 = vmatpush1.msra.mxu0 0.0
    %739 = vmatprep.subr.mxu0 0.0
    %740 = vmatpush1.msra.mxu0 0.0
    %741 = vmatprep.subr.mxu0 0.0
    %742 = vmatpush1.msra.mxu0 0.0
    %743 = vmatprep.subr.mxu0 0.0
    %744 = vmatpush1.msra.mxu0 %v81
    %745 = vmatprep.subr.mxu0 0.0
    %746 = vmatpush1.msra.mxu0 %v80
    %747 = vmatprep.subr.mxu0 0.0
    %748 = vmatpush1.msra.mxu0 %v79
    %749 = vmatprep.subr.mxu0 0.0
    %750 = vmatpush1.msra.mxu0 %v78
    %751 = vmatprep.subr.mxu0 0.0
    %752 = vmatpush2.msra.mxu0 0.0
    %753 = vmatprep.subr.mxu0 0.0
    %754 = vmatpush2.msra.mxu0 0.0
    %755 = vmatprep.subr.mxu0 0.0
    %756 = vmatpush2.msra.mxu0 0.0
    %757 = vmatprep.subr.mxu0 0.0
    %758 = vmatpush2.msra.mxu0 0.0
    %759 = vmatprep.subr.mxu0 0.0
    %760 = vmatpush2.msra.mxu0 0.0
    %761 = vmatprep.subr.mxu0 0.0
    %762 = vmatpush2.msra.mxu0 0.0
    %763 = vmatprep.subr.mxu0 0.0
    %764 = vmatpush2.msra.mxu0 0.0
    %765 = vmatprep.subr.mxu0 0.0
    %766 = vmatpush2.msra.mxu0 0.0
    %767 = vmatprep.subr.mxu0 0.0
    %768 = vmatpush2.msra.mxu0 0.0
    %769 = vmatprep.subr.mxu0 0.0
    %770 = vmatpush2.msra.mxu0 0.0
    %771 = vmatprep.subr.mxu0 0.0
    %772 = vmatpush2.msra.mxu0 0.0
    %773 = vmatprep.subr.mxu0 0.0
    %774 = vmatpush2.msra.mxu0 0.0
    %775 = vmatprep.subr.mxu0 0.0
    %776 = vmatpush2.msra.mxu0 0.0
    %777 = vmatprep.subr.mxu0 0.0
    %778 = vmatpush2.msra.mxu0 0.0
    %779 = vmatprep.subr.mxu0 0.0
    %780 = vmatpush2.msra.mxu0 0.0
    %781 = vmatprep.subr.mxu0 0.0
    %782 = vmatpush2.msra.mxu0 0.0
    %783 = vmatprep.mubr.f32.mxu0 0.0
    %784 = vmatmul.mubr.f32.gmra.mxu0 %v714
    %v785 = vpop.f32.mrf.mxu0
    %v786 = vadd.f32 %v712, %v785
    %v787 = vpop.f32.mrf.mxu0
    %788 = vmatprep.mubr.f32.mxu0 0.0
    %789 = vmatmul.mubr.f32.gmra.mxu0 %v717
    %v790 = vpop.f32.mrf.mxu0
    %v791 = vadd.f32 %v712, %v790
    %v792 = vpop.f32.mrf.mxu0
    %793 = vdwg.mxu0
    %v794 = vmul.f32 %v786, 0.5
    %v795 = vmul.f32 %v791, 0.5
    %v796 = vmul.f32 %v786, 0.70710677
    %v797 = vmul.f32 %v791, 0.70710677
    %v798 = verf.f32.pop %v796
    %v799 = verf.f32.pop %v797
    %v800 = vadd.f32 %v798, 1.0
    %v801 = vadd.f32 %v799, 1.0
    %v802 = vmul.f32 %v794, %v800
    %v803 = vmul.f32 %v795, %v801
    %v804 = vlaneseq
    %v805 = vshrl.u32 %v804, 7
    %v806 = vsub.s32 5, %v805
    %v807 = vrot.slane %v90, %v806
    %v809 = vsel %vm370, %v802, 0
    %v812 = vsel %vm370, %v803, 0
    %814 = vmatprep.subr.mxu0 0.0
    %815 = vmatpush1.msra.mxu0 0.0
    %816 = vmatprep.subr.mxu0 0.0
    %817 = vmatpush1.msra.mxu0 0.0
    %818 = vmatprep.subr.mxu0 0.0
    %819 = vmatpush1.msra.mxu0 0.0
    %820 = vmatprep.subr.mxu0 0.0
    %821 = vmatpush1.msra.mxu0 0.0
    %822 = vmatprep.subr.mxu0 0.0
    %823 = vmatpush1.msra.mxu0 0.0
    %824 = vmatprep.subr.mxu0 0.0
    %825 = vmatpush1.msra.mxu0 0.0
    %826 = vmatprep.subr.mxu0 0.0
    %827 = vmatpush1.msra.mxu0 0.0
    %828 = vmatprep.subr.mxu0 0.0
    %829 = vmatpush1.msra.mxu0 0.0
    %830 = vmatprep.subr.mxu0 0.0
    %831 = vmatpush1.msra.mxu0 %v89
    %832 = vmatprep.subr.mxu0 0.0
    %833 = vmatpush1.msra.mxu0 %v88
    %834 = vmatprep.subr.mxu0 0.0
    %835 = vmatpush1.msra.mxu0 %v87
    %836 = vmatprep.subr.mxu0 0.0
    %837 = vmatpush1.msra.mxu0 %v86
    %838 = vmatprep.subr.mxu0 0.0
    %839 = vmatpush1.msra.mxu0 %v85
    %840 = vmatprep.subr.mxu0 0.0
    %841 = vmatpush1.msra.mxu0 %v84
    %842 = vmatprep.subr.mxu0 0.0
    %843 = vmatpush1.msra.mxu0 %v83
    %844 = vmatprep.subr.mxu0 0.0
    %845 = vmatpush1.msra.mxu0 %v82
    %846 = vmatprep.subr.mxu0 0.0
    %847 = vmatpush2.msra.mxu0 0.0
    %848 = vmatprep.subr.mxu0 0.0
    %849 = vmatpush2.msra.mxu0 0.0
    %850 = vmatprep.subr.mxu0 0.0
    %851 = vmatpush2.msra.mxu0 0.0
    %852 = vmatprep.subr.mxu0 0.0
    %853 = vmatpush2.msra.mxu0 0.0
    %854 = vmatprep.subr.mxu0 0.0
    %855 = vmatpush2.msra.mxu0 0.0
    %856 = vmatprep.subr.mxu0 0.0
    %857 = vmatpush2.msra.mxu0 0.0
    %858 = vmatprep.subr.mxu0 0.0
    %859 = vmatpush2.msra.mxu0 0.0
    %860 = vmatprep.subr.mxu0 0.0
    %861 = vmatpush2.msra.mxu0 0.0
    %862 = vmatprep.subr.mxu0 0.0
    %863 = vmatpush2.msra.mxu0 0.0
    %864 = vmatprep.subr.mxu0 0.0
    %865 = vmatpush2.msra.mxu0 0.0
    %866 = vmatprep.subr.mxu0 0.0
    %867 = vmatpush2.msra.mxu0 0.0
    %868 = vmatprep.subr.mxu0 0.0
    %869 = vmatpush2.msra.mxu0 0.0
    %870 = vmatprep.subr.mxu0 0.0
    %871 = vmatpush2.msra.mxu0 0.0
    %872 = vmatprep.subr.mxu0 0.0
    %873 = vmatpush2.msra.mxu0 0.0
    %874 = vmatprep.subr.mxu0 0.0
    %875 = vmatpush2.msra.mxu0 0.0
    %876 = vmatprep.subr.mxu0 0.0
    %877 = vmatpush2.msra.mxu0 0.0
    %878 = vmatprep.mubr.f32.mxu0 0.0
    %879 = vmatmul.mubr.f32.gmra.mxu0 %v809
    %v880 = vpop.f32.mrf.mxu0
    %v881 = vadd.f32 %v807, %v880
    %v882 = vpop.f32.mrf.mxu0
    %883 = vmatprep.mubr.f32.mxu0 0.0
    %884 = vmatmul.mubr.f32.gmra.mxu0 %v812
    %v885 = vpop.f32.mrf.mxu0
    %v886 = vadd.f32 %v807, %v885
    %v887 = vpop.f32.mrf.mxu0
    %888 = vdwg.mxu0
    %v889 = vadd.f32 %v881, %v707
    %v890 = vadd.f32 %v886, %v708
    %v891 = vsel %vm95, %v889, 0.0
    %892 = vadd.xlane.f32.xlu0 %v891
    %v893 = vpop.xlane.xlu0 %892
    %v894 = vsel %vm95, %v890, 0.0
    %895 = vadd.xlane.f32.xlu0 %v894
    %v896 = vpop.xlane.xlu0 %895
    %v897 = vmul.f32 %v893, %v676
    %v898 = vmul.f32 %v896, %v676
    %v899 = vsub.f32 %v889, %v897
    %v900 = vsub.f32 %v890, %v898
    %v901 = vmul.f32 %v899, %v899
    %v902 = vmul.f32 %v900, %v900
    %v903 = vsel %vm95, %v901, 0.0
    %904 = vadd.xlane.f32.xlu0 %v903
    %v905 = vpop.xlane.xlu0 %904
    %v906 = vsel %vm95, %v902, 0.0
    %907 = vadd.xlane.f32.xlu0 %v906
    %v908 = vpop.xlane.xlu0 %907
    %v909 = vmul.f32 %v905, %v676
    %v910 = vmul.f32 %v908, %v676
    %v911 = vadd.f32 %v909, 1e-12
    %v912 = vadd.f32 %v910, 1e-12
    %v913 = vrsqrt.pop %v911
    %v914 = vrsqrt.pop %v912
    %v915 = vmul.f32 %v899, %v913
    %v916 = vmul.f32 %v900, %v914
    %v917 = vlaneseq
    %v918 = vshrl.u32 %v917, 7
    %v919 = vsub.s32 6, %v918
    %v920 = vrot.slane %v90, %v919
    %v921 = vmul.f32 %v915, %v920
    %v922 = vmul.f32 %v916, %v920
    %v923 = vlaneseq
    %v924 = vshrl.u32 %v923, 7
    %v925 = vsub.s32 7, %v924
    %v926 = vrot.slane %v90, %v925
    %v927 = vadd.f32 %v921, %v926
    %v928 = vadd.f32 %v922, %v926
    %s929 = scalar_lea.vmem %s4, 32
    %v930 = vld [vmem:[%s929] sm:$0xff]
    %v931 = vld [vmem:[%s929 + $0x8] sm:$0xff]
    %v932 = vld [vmem:[%s929 + $0x10] sm:$0xff]
    %v933 = vld [vmem:[%s929 + $0x18] sm:$0xff]
    %s934 = scalar_lea.vmem %s5, 32
    %v935 = vld [vmem:[%s934] sm:$0xff]
    %v936 = vld [vmem:[%s934 + $0x8] sm:$0xff]
    %v937 = vld [vmem:[%s934 + $0x10] sm:$0xff]
    %v938 = vld [vmem:[%s934 + $0x18] sm:$0xff]
    %s939 = scalar_lea.vmem %s6, 32
    %v940 = vld [vmem:[%s939] sm:$0xff]
    %v941 = vld [vmem:[%s939 + $0x8] sm:$0xff]
    %v942 = vld [vmem:[%s939 + $0x10] sm:$0xff]
    %v943 = vld [vmem:[%s939 + $0x18] sm:$0xff]
    %s944 = scalar_lea.vmem %s7, 64
    %v945 = vld [vmem:[%s944] sm:$0xff]
    %v946 = vld [vmem:[%s944 + $0x8] sm:$0xff]
    %v947 = vld [vmem:[%s944 + $0x10] sm:$0xff]
    %v948 = vld [vmem:[%s944 + $0x18] sm:$0xff]
    %v949 = vld [vmem:[%s944 + $0x20] sm:$0xff]
    %v950 = vld [vmem:[%s944 + $0x28] sm:$0xff]
    %v951 = vld [vmem:[%s944 + $0x30] sm:$0xff]
    %v952 = vld [vmem:[%s944 + $0x38] sm:$0xff]
    %s953 = scalar_lea.vmem [#allocation2], 8
    %v954 = vld [vmem:[%s953] sm:$0xff]
    %v955 = vlaneseq
    %v956 = vshrl.u32 %v955, 7
    %v957 = vsub.s32 0, %v956
    %v958 = vrot.slane %v954, %v957
    %v960 = vsel %vm95, %v927, 0
    %v963 = vsel %vm95, %v928, 0
    %965 = vmatprep.subr.mxu0 0.0
    %966 = vmatpush1.msra.mxu0 0.0
    %967 = vmatprep.subr.mxu0 0.0
    %968 = vmatpush1.msra.mxu0 0.0
    %969 = vmatprep.subr.mxu0 0.0
    %970 = vmatpush1.msra.mxu0 0.0
    %971 = vmatprep.subr.mxu0 0.0
    %972 = vmatpush1.msra.mxu0 0.0
    %973 = vmatprep.subr.mxu0 0.0
    %974 = vmatpush1.msra.mxu0 0.0
    %975 = vmatprep.subr.mxu0 0.0
    %976 = vmatpush1.msra.mxu0 0.0
    %977 = vmatprep.subr.mxu0 0.0
    %978 = vmatpush1.msra.mxu0 0.0
    %979 = vmatprep.subr.mxu0 0.0
    %980 = vmatpush1.msra.mxu0 0.0
    %981 = vmatprep.subr.mxu0 0.0
    %982 = vmatpush1.msra.mxu0 0.0
    %983 = vmatprep.subr.mxu0 0.0
    %984 = vmatpush1.msra.mxu0 0.0
    %985 = vmatprep.subr.mxu0 0.0
    %986 = vmatpush1.msra.mxu0 0.0
    %987 = vmatprep.subr.mxu0 0.0
    %988 = vmatpush1.msra.mxu0 0.0
    %989 = vmatprep.subr.mxu0 0.0
    %990 = vmatpush1.msra.mxu0 %v933
    %991 = vmatprep.subr.mxu0 0.0
    %992 = vmatpush1.msra.mxu0 %v932
    %993 = vmatprep.subr.mxu0 0.0
    %994 = vmatpush1.msra.mxu0 %v931
    %995 = vmatprep.subr.mxu0 0.0
    %996 = vmatpush1.msra.mxu0 %v930
    %997 = vmatprep.subr.mxu0 0.0
    %998 = vmatpush2.msra.mxu0 0.0
    %999 = vmatprep.subr.mxu0 0.0
    %1000 = vmatpush2.msra.mxu0 0.0
    %1001 = vmatprep.subr.mxu0 0.0
    %1002 = vmatpush2.msra.mxu0 0.0
    %1003 = vmatprep.subr.mxu0 0.0
    %1004 = vmatpush2.msra.mxu0 0.0
    %1005 = vmatprep.subr.mxu0 0.0
    %1006 = vmatpush2.msra.mxu0 0.0
    %1007 = vmatprep.subr.mxu0 0.0
    %1008 = vmatpush2.msra.mxu0 0.0
    %1009 = vmatprep.subr.mxu0 0.0
    %1010 = vmatpush2.msra.mxu0 0.0
    %1011 = vmatprep.subr.mxu0 0.0
    %1012 = vmatpush2.msra.mxu0 0.0
    %1013 = vmatprep.subr.mxu0 0.0
    %1014 = vmatpush2.msra.mxu0 0.0
    %1015 = vmatprep.subr.mxu0 0.0
    %1016 = vmatpush2.msra.mxu0 0.0
    %1017 = vmatprep.subr.mxu0 0.0
    %1018 = vmatpush2.msra.mxu0 0.0
    %1019 = vmatprep.subr.mxu0 0.0
    %1020 = vmatpush2.msra.mxu0 0.0
    %1021 = vmatprep.subr.mxu0 0.0
    %1022 = vmatpush2.msra.mxu0 0.0
    %1023 = vmatprep.subr.mxu0 0.0
    %1024 = vmatpush2.msra.mxu0 0.0
    %1025 = vmatprep.subr.mxu0 0.0
    %1026 = vmatpush2.msra.mxu0 0.0
    %1027 = vmatprep.subr.mxu0 0.0
    %1028 = vmatpush2.msra.mxu0 0.0
    %1029 = vmatprep.mubr.f32.mxu0 0.0
    %1030 = vmatmul.mubr.f32.gmra.mxu0 %v960
    %v1031 = vpop.f32.mrf.mxu0
    %v1032 = vadd.f32 %v958, %v1031
    %v1033 = vpop.f32.mrf.mxu0
    %1034 = vmatprep.mubr.f32.mxu0 0.0
    %1035 = vmatmul.mubr.f32.gmra.mxu0 %v963
    %v1036 = vpop.f32.mrf.mxu0
    %v1037 = vadd.f32 %v958, %v1036
    %v1038 = vpop.f32.mrf.mxu0
    %1039 = vdwg.mxu0
    %v1040 = vmul.f32 %v1032, %v186
    %v1041 = vmul.f32 %v1037, %v188
    %v1042 = vmul.f32 %v1032, %v190
    %v1043 = vmul.f32 %v1037, %v192
    %v1044 = vmul.f32 %v1032, %v194
    %v1045 = vmul.f32 %v1037, %v196
    %v1046 = vmul.f32 %v1032, %v198
    %v1047 = vmul.f32 %v1037, %v200
    %v1048 = vmul.f32 %v1032, %v218
    %v1049 = vmul.f32 %v1037, %v220
    %v1050 = vmul.f32 %v1032, %v222
    %v1051 = vmul.f32 %v1037, %v224
    %v1052 = vmul.f32 %v1032, %v226
    %v1053 = vmul.f32 %v1037, %v228
    %v1054 = vmul.f32 %v1032, %v230
    %v1055 = vmul.f32 %v1037, %v232
    %1064 = vrot.lane.b32.xlu0 %v1040, 96
    %v1065 = vpop.permute.xlu0 %1064
    %1066 = vrot.lane.b32.xlu0 %v1041, 96
    %v1067 = vpop.permute.xlu0 %1066
    %1068 = vrot.lane.b32.xlu0 %v1042, 96
    %v1069 = vpop.permute.xlu0 %1068
    %1070 = vrot.lane.b32.xlu0 %v1043, 96
    %v1071 = vpop.permute.xlu0 %1070
    %1072 = vrot.lane.b32.xlu0 %v1044, 96
    %v1073 = vpop.permute.xlu0 %1072
    %1074 = vrot.lane.b32.xlu0 %v1045, 96
    %v1075 = vpop.permute.xlu0 %1074
    %1076 = vrot.lane.b32.xlu0 %v1046, 96
    %v1077 = vpop.permute.xlu0 %1076
    %1078 = vrot.lane.b32.xlu0 %v1047, 96
    %v1079 = vpop.permute.xlu0 %1078
    %v1081 = vsel %vm95, %v1032, 0
    %v1084 = vsel %vm95, %v1037, 0
    %v1086 = vsel %vm95, %v1065, 0
    %v1088 = vsel %vm95, %v1067, 0
    %v1090 = vsel %vm95, %v1069, 0
    %v1092 = vsel %vm95, %v1071, 0
    %v1094 = vsel %vm95, %v1073, 0
    %v1096 = vsel %vm95, %v1075, 0
    %v1098 = vsel %vm95, %v1077, 0
    %v1100 = vsel %vm95, %v1079, 0
    %1102 = vmatprep.subr.mxu0 0.0
    %1103 = vmatpush1.xpose.msra.mxu0 0.0
    %1104 = vmatprep.subr.mxu0 0.0
    %1105 = vmatpush1.xpose.msra.mxu0 0.0
    %1106 = vmatprep.subr.mxu0 0.0
    %1107 = vmatpush1.xpose.msra.mxu0 0.0
    %1108 = vmatprep.subr.mxu0 0.0
    %1109 = vmatpush1.xpose.msra.mxu0 0.0
    %1110 = vmatprep.subr.mxu0 0.0
    %1111 = vmatpush1.xpose.msra.mxu0 0.0
    %1112 = vmatprep.subr.mxu0 0.0
    %1113 = vmatpush1.xpose.msra.mxu0 0.0
    %1114 = vmatprep.subr.mxu0 0.0
    %1115 = vmatpush1.xpose.msra.mxu0 0.0
    %1116 = vmatprep.subr.mxu0 0.0
    %1117 = vmatpush1.xpose.msra.mxu0 0.0
    %1118 = vmatprep.subr.mxu0 0.0
    %1119 = vmatpush1.xpose.msra.mxu0 %v1100
    %1120 = vmatprep.subr.mxu0 0.0
    %1121 = vmatpush1.xpose.msra.mxu0 %v1098
    %1122 = vmatprep.subr.mxu0 0.0
    %1123 = vmatpush1.xpose.msra.mxu0 %v1096
    %1124 = vmatprep.subr.mxu0 0.0
    %1125 = vmatpush1.xpose.msra.mxu0 %v1094
    %1126 = vmatprep.subr.mxu0 0.0
    %1127 = vmatpush1.xpose.msra.mxu0 %v1092
    %1128 = vmatprep.subr.mxu0 0.0
    %1129 = vmatpush1.xpose.msra.mxu0 %v1090
    %1130 = vmatprep.subr.mxu0 0.0
    %1131 = vmatpush1.xpose.msra.mxu0 %v1088
    %1132 = vmatprep.subr.mxu0 0.0
    %1133 = vmatpush1.xpose.msra.mxu0 %v1086
    %1134 = vmatprep.subr.mxu0 0.0
    %1135 = vmatpush2.xpose.msra.mxu0 0.0
    %1136 = vmatprep.subr.mxu0 0.0
    %1137 = vmatpush2.xpose.msra.mxu0 0.0
    %1138 = vmatprep.subr.mxu0 0.0
    %1139 = vmatpush2.xpose.msra.mxu0 0.0
    %1140 = vmatprep.subr.mxu0 0.0
    %1141 = vmatpush2.xpose.msra.mxu0 0.0
    %1142 = vmatprep.subr.mxu0 0.0
    %1143 = vmatpush2.xpose.msra.mxu0 0.0
    %1144 = vmatprep.subr.mxu0 0.0
    %1145 = vmatpush2.xpose.msra.mxu0 0.0
    %1146 = vmatprep.subr.mxu0 0.0
    %1147 = vmatpush2.xpose.msra.mxu0 0.0
    %1148 = vmatprep.subr.mxu0 0.0
    %1149 = vmatpush2.xpose.msra.mxu0 0.0
    %1150 = vmatprep.subr.mxu0 0.0
    %1151 = vmatpush2.xpose.msra.mxu0 0.0
    %1152 = vmatprep.subr.mxu0 0.0
    %1153 = vmatpush2.xpose.msra.mxu0 0.0
    %1154 = vmatprep.subr.mxu0 0.0
    %1155 = vmatpush2.xpose.msra.mxu0 0.0
    %1156 = vmatprep.subr.mxu0 0.0
    %1157 = vmatpush2.xpose.msra.mxu0 0.0
    %1158 = vmatprep.subr.mxu0 0.0
    %1159 = vmatpush2.xpose.msra.mxu0 0.0
    %1160 = vmatprep.subr.mxu0 0.0
    %1161 = vmatpush2.xpose.msra.mxu0 0.0
    %1162 = vmatprep.subr.mxu0 0.0
    %1163 = vmatpush2.xpose.msra.mxu0 0.0
    %1164 = vmatprep.subr.mxu0 0.0
    %1165 = vmatpush2.xpose.msra.mxu0 0.0
    %1166 = vmatprep.mubr.f32.mxu0 0.0
    %1167 = vmatmul.mubr.f32.gmra.mxu0 %v1081
    %v1168 = vpop.f32.mrf.mxu0
    %v1169 = vadd.f32 %v52, %v1168
    %v1170 = vpop.f32.mrf.mxu0
    %1171 = vmatprep.mubr.f32.mxu0 0.0
    %1172 = vmatmul.mubr.f32.gmra.mxu0 %v1084
    %v1173 = vpop.f32.mrf.mxu0
    %v1174 = vadd.f32 %v53, %v1173
    %v1175 = vpop.f32.mrf.mxu0
    %1176 = vdwg.mxu0
    %v1177 = vsel %vm370, %v1169, -inf
    %1178 = vmax.xlane.f32.xlu0 %v1177
    %v1179 = vpop.xlane.xlu0 %1178
    %v1180 = vsel %vm370, %v1174, -inf
    %1181 = vmax.xlane.f32.xlu0 %v1180
    %v1182 = vpop.xlane.xlu0 %1181
    %v1183 = vsub.f32 %v1169, %v1179
    %v1184 = vsub.f32 %v1174, %v1182
    %v1185 = vmul.f32 %v1183, 1.442695
    %v1186 = vpow.pop %v1185
    %v1187 = vmul.f32 %v1184, 1.442695
    %v1188 = vpow.pop %v1187
    %v1190 = vsel %vm370, %v1186, 0
    %v1193 = vsel %vm370, %v1188, 0
    %1195 = vmatprep.subr.mxu0 0.0
    %1196 = vmatpush1.msra.mxu0 0.0
    %1197 = vmatprep.subr.mxu0 0.0
    %1198 = vmatpush1.msra.mxu0 0.0
    %1199 = vmatprep.subr.mxu0 0.0
    %1200 = vmatpush1.msra.mxu0 0.0
    %1201 = vmatprep.subr.mxu0 0.0
    %1202 = vmatpush1.msra.mxu0 0.0
    %1203 = vmatprep.subr.mxu0 0.0
    %1204 = vmatpush1.msra.mxu0 0.0
    %1205 = vmatprep.subr.mxu0 0.0
    %1206 = vmatpush1.msra.mxu0 0.0
    %1207 = vmatprep.subr.mxu0 0.0
    %1208 = vmatpush1.msra.mxu0 0.0
    %1209 = vmatprep.subr.mxu0 0.0
    %1210 = vmatpush1.msra.mxu0 0.0
    %1211 = vmatprep.subr.mxu0 0.0
    %1212 = vmatpush1.msra.mxu0 %v69
    %1213 = vmatprep.subr.mxu0 0.0
    %1214 = vmatpush1.msra.mxu0 %v68
    %1215 = vmatprep.subr.mxu0 0.0
    %1216 = vmatpush1.msra.mxu0 %v67
    %1217 = vmatprep.subr.mxu0 0.0
    %1218 = vmatpush1.msra.mxu0 %v66
    %1219 = vmatprep.subr.mxu0 0.0
    %1220 = vmatpush1.msra.mxu0 %v65
    %1221 = vmatprep.subr.mxu0 0.0
    %1222 = vmatpush1.msra.mxu0 %v64
    %1223 = vmatprep.subr.mxu0 0.0
    %1224 = vmatpush1.msra.mxu0 %v63
    %1225 = vmatprep.subr.mxu0 0.0
    %1226 = vmatpush1.msra.mxu0 %v62
    %1227 = vmatprep.subr.mxu0 0.0
    %1228 = vmatpush2.msra.mxu0 0.0
    %1229 = vmatprep.subr.mxu0 0.0
    %1230 = vmatpush2.msra.mxu0 0.0
    %1231 = vmatprep.subr.mxu0 0.0
    %1232 = vmatpush2.msra.mxu0 0.0
    %1233 = vmatprep.subr.mxu0 0.0
    %1234 = vmatpush2.msra.mxu0 0.0
    %1235 = vmatprep.subr.mxu0 0.0
    %1236 = vmatpush2.msra.mxu0 0.0
    %1237 = vmatprep.subr.mxu0 0.0
    %1238 = vmatpush2.msra.mxu0 0.0
    %1239 = vmatprep.subr.mxu0 0.0
    %1240 = vmatpush2.msra.mxu0 0.0
    %1241 = vmatprep.subr.mxu0 0.0
    %1242 = vmatpush2.msra.mxu0 0.0
    %1243 = vmatprep.subr.mxu0 0.0
    %1244 = vmatpush2.msra.mxu0 0.0
    %1245 = vmatprep.subr.mxu0 0.0
    %1246 = vmatpush2.msra.mxu0 0.0
    %1247 = vmatprep.subr.mxu0 0.0
    %1248 = vmatpush2.msra.mxu0 0.0
    %1249 = vmatprep.subr.mxu0 0.0
    %1250 = vmatpush2.msra.mxu0 0.0
    %1251 = vmatprep.subr.mxu0 0.0
    %1252 = vmatpush2.msra.mxu0 0.0
    %1253 = vmatprep.subr.mxu0 0.0
    %1254 = vmatpush2.msra.mxu0 0.0
    %1255 = vmatprep.subr.mxu0 0.0
    %1256 = vmatpush2.msra.mxu0 0.0
    %1257 = vmatprep.subr.mxu0 0.0
    %1258 = vmatpush2.msra.mxu0 0.0
    %1259 = vmatprep.mubr.f32.mxu0 0.0
    %1260 = vmatmul.mubr.f32.gmra.mxu0 %v1190
    %v1261 = vpop.f32.mrf.mxu0
    %v1262 = vadd.f32 0.0, %v1261
    %v1263 = vpop.f32.mrf.mxu0
    %1264 = vmatprep.mubr.f32.mxu0 0.0
    %1265 = vmatmul.mubr.f32.gmra.mxu0 %v1193
    %v1266 = vpop.f32.mrf.mxu0
    %v1267 = vadd.f32 0.0, %v1266
    %v1268 = vpop.f32.mrf.mxu0
    %1269 = vdwg.mxu0
    %v1270 = vrcp.pop %v1262
    %v1271 = vrcp.pop %v1267
    %v1272 = vmul.f32 %v1186, %v1270
    %v1273 = vmul.f32 %v1188, %v1271
    %1276 = vrot.lane.b32.xlu0 %v1272, 64
    %v1277 = vpop.permute.xlu0 %1276
    %1278 = vrot.lane.b32.xlu0 %v1273, 64
    %v1279 = vpop.permute.xlu0 %1278
    %vm1282 = vcmask 1048064
    %1283 = vst.msk [vmem:[#allocation6] sm:$0xff] %vm1282, %v1277
    %1284 = vst.msk [vmem:[#allocation6 + $0x8] sm:$0xff] %vm1282, %v1279
    %1293 = vrot.lane.b32.xlu0 %v1048, 64
    %v1294 = vpop.permute.xlu0 %1293
    %1295 = vrot.lane.b32.xlu0 %v1049, 64
    %v1296 = vpop.permute.xlu0 %1295
    %1297 = vrot.lane.b32.xlu0 %v1050, 64
    %v1298 = vpop.permute.xlu0 %1297
    %1299 = vrot.lane.b32.xlu0 %v1051, 64
    %v1300 = vpop.permute.xlu0 %1299
    %1301 = vrot.lane.b32.xlu0 %v1052, 64
    %v1302 = vpop.permute.xlu0 %1301
    %1303 = vrot.lane.b32.xlu0 %v1053, 64
    %v1304 = vpop.permute.xlu0 %1303
    %1305 = vrot.lane.b32.xlu0 %v1054, 64
    %v1306 = vpop.permute.xlu0 %1305
    %1307 = vrot.lane.b32.xlu0 %v1055, 64
    %v1308 = vpop.permute.xlu0 %1307
    %v1317 = vsel %vm370, %v1272, 0
    %v1319 = vsel %vm370, %v1273, 0
    %1321 = vmatprep.subr.mxu0 0.0
    %1322 = vmatpush1.msra.mxu0 0.0
    %1323 = vmatprep.subr.mxu0 0.0
    %1324 = vmatpush1.msra.mxu0 0.0
    %1325 = vmatprep.subr.mxu0 0.0
    %1326 = vmatpush1.msra.mxu0 0.0
    %1327 = vmatprep.subr.mxu0 0.0
    %1328 = vmatpush1.msra.mxu0 0.0
    %1329 = vmatprep.subr.mxu0 0.0
    %1330 = vmatpush1.msra.mxu0 0.0
    %1331 = vmatprep.subr.mxu0 0.0
    %1332 = vmatpush1.msra.mxu0 0.0
    %1333 = vmatprep.subr.mxu0 0.0
    %1334 = vmatpush1.msra.mxu0 0.0
    %1335 = vmatprep.subr.mxu0 0.0
    %1336 = vmatpush1.msra.mxu0 0.0
    %1337 = vmatprep.subr.mxu0 0.0
    %1338 = vmatpush1.msra.mxu0 %v1308
    %1339 = vmatprep.subr.mxu0 0.0
    %1340 = vmatpush1.msra.mxu0 %v1306
    %1341 = vmatprep.subr.mxu0 0.0
    %1342 = vmatpush1.msra.mxu0 %v1304
    %1343 = vmatprep.subr.mxu0 0.0
    %1344 = vmatpush1.msra.mxu0 %v1302
    %1345 = vmatprep.subr.mxu0 0.0
    %1346 = vmatpush1.msra.mxu0 %v1300
    %1347 = vmatprep.subr.mxu0 0.0
    %1348 = vmatpush1.msra.mxu0 %v1298
    %1349 = vmatprep.subr.mxu0 0.0
    %1350 = vmatpush1.msra.mxu0 %v1296
    %1351 = vmatprep.subr.mxu0 0.0
    %1352 = vmatpush1.msra.mxu0 %v1294
    %1353 = vmatprep.subr.mxu0 0.0
    %1354 = vmatpush2.msra.mxu0 0.0
    %1355 = vmatprep.subr.mxu0 0.0
    %1356 = vmatpush2.msra.mxu0 0.0
    %1357 = vmatprep.subr.mxu0 0.0
    %1358 = vmatpush2.msra.mxu0 0.0
    %1359 = vmatprep.subr.mxu0 0.0
    %1360 = vmatpush2.msra.mxu0 0.0
    %1361 = vmatprep.subr.mxu0 0.0
    %1362 = vmatpush2.msra.mxu0 0.0
    %1363 = vmatprep.subr.mxu0 0.0
    %1364 = vmatpush2.msra.mxu0 0.0
    %1365 = vmatprep.subr.mxu0 0.0
    %1366 = vmatpush2.msra.mxu0 0.0
    %1367 = vmatprep.subr.mxu0 0.0
    %1368 = vmatpush2.msra.mxu0 0.0
    %1369 = vmatprep.subr.mxu0 0.0
    %1370 = vmatpush2.msra.mxu0 0.0
    %1371 = vmatprep.subr.mxu0 0.0
    %1372 = vmatpush2.msra.mxu0 0.0
    %1373 = vmatprep.subr.mxu0 0.0
    %1374 = vmatpush2.msra.mxu0 0.0
    %1375 = vmatprep.subr.mxu0 0.0
    %1376 = vmatpush2.msra.mxu0 0.0
    %1377 = vmatprep.subr.mxu0 0.0
    %1378 = vmatpush2.msra.mxu0 0.0
    %1379 = vmatprep.subr.mxu0 0.0
    %1380 = vmatpush2.msra.mxu0 0.0
    %1381 = vmatprep.subr.mxu0 0.0
    %1382 = vmatpush2.msra.mxu0 0.0
    %1383 = vmatprep.subr.mxu0 0.0
    %1384 = vmatpush2.msra.mxu0 0.0
    %1385 = vmatprep.mubr.f32.mxu0 0.0
    %1386 = vmatmul.mubr.f32.gmra.mxu0 %v1317
    %v1387 = vpop.f32.mrf.mxu0
    %v1388 = vadd.f32 0.0, %v1387
    %v1389 = vpop.f32.mrf.mxu0
    %1390 = vmatprep.mubr.f32.mxu0 0.0
    %1391 = vmatmul.mubr.f32.gmra.mxu0 %v1319
    %v1392 = vpop.f32.mrf.mxu0
    %v1393 = vadd.f32 0.0, %v1392
    %v1394 = vpop.f32.mrf.mxu0
    %1395 = vdwg.mxu0
    %v1396 = vlaneseq
    %v1397 = vshrl.u32 %v1396, 7
    %v1398 = vsub.s32 1, %v1397
    %v1399 = vrot.slane %v954, %v1398
    %v1401 = vsel %vm95, %v1388, 0
    %v1404 = vsel %vm95, %v1393, 0
    %1406 = vmatprep.subr.mxu0 0.0
    %1407 = vmatpush1.msra.mxu0 0.0
    %1408 = vmatprep.subr.mxu0 0.0
    %1409 = vmatpush1.msra.mxu0 0.0
    %1410 = vmatprep.subr.mxu0 0.0
    %1411 = vmatpush1.msra.mxu0 0.0
    %1412 = vmatprep.subr.mxu0 0.0
    %1413 = vmatpush1.msra.mxu0 0.0
    %1414 = vmatprep.subr.mxu0 0.0
    %1415 = vmatpush1.msra.mxu0 0.0
    %1416 = vmatprep.subr.mxu0 0.0
    %1417 = vmatpush1.msra.mxu0 0.0
    %1418 = vmatprep.subr.mxu0 0.0
    %1419 = vmatpush1.msra.mxu0 0.0
    %1420 = vmatprep.subr.mxu0 0.0
    %1421 = vmatpush1.msra.mxu0 0.0
    %1422 = vmatprep.subr.mxu0 0.0
    %1423 = vmatpush1.msra.mxu0 0.0
    %1424 = vmatprep.subr.mxu0 0.0
    %1425 = vmatpush1.msra.mxu0 0.0
    %1426 = vmatprep.subr.mxu0 0.0
    %1427 = vmatpush1.msra.mxu0 0.0
    %1428 = vmatprep.subr.mxu0 0.0
    %1429 = vmatpush1.msra.mxu0 0.0
    %1430 = vmatprep.subr.mxu0 0.0
    %1431 = vmatpush1.msra.mxu0 %v938
    %1432 = vmatprep.subr.mxu0 0.0
    %1433 = vmatpush1.msra.mxu0 %v937
    %1434 = vmatprep.subr.mxu0 0.0
    %1435 = vmatpush1.msra.mxu0 %v936
    %1436 = vmatprep.subr.mxu0 0.0
    %1437 = vmatpush1.msra.mxu0 %v935
    %1438 = vmatprep.subr.mxu0 0.0
    %1439 = vmatpush2.msra.mxu0 0.0
    %1440 = vmatprep.subr.mxu0 0.0
    %1441 = vmatpush2.msra.mxu0 0.0
    %1442 = vmatprep.subr.mxu0 0.0
    %1443 = vmatpush2.msra.mxu0 0.0
    %1444 = vmatprep.subr.mxu0 0.0
    %1445 = vmatpush2.msra.mxu0 0.0
    %1446 = vmatprep.subr.mxu0 0.0
    %1447 = vmatpush2.msra.mxu0 0.0
    %1448 = vmatprep.subr.mxu0 0.0
    %1449 = vmatpush2.msra.mxu0 0.0
    %1450 = vmatprep.subr.mxu0 0.0
    %1451 = vmatpush2.msra.mxu0 0.0
    %1452 = vmatprep.subr.mxu0 0.0
    %1453 = vmatpush2.msra.mxu0 0.0
    %1454 = vmatprep.subr.mxu0 0.0
    %1455 = vmatpush2.msra.mxu0 0.0
    %1456 = vmatprep.subr.mxu0 0.0
    %1457 = vmatpush2.msra.mxu0 0.0
    %1458 = vmatprep.subr.mxu0 0.0
    %1459 = vmatpush2.msra.mxu0 0.0
    %1460 = vmatprep.subr.mxu0 0.0
    %1461 = vmatpush2.msra.mxu0 0.0
    %1462 = vmatprep.subr.mxu0 0.0
    %1463 = vmatpush2.msra.mxu0 0.0
    %1464 = vmatprep.subr.mxu0 0.0
    %1465 = vmatpush2.msra.mxu0 0.0
    %1466 = vmatprep.subr.mxu0 0.0
    %1467 = vmatpush2.msra.mxu0 0.0
    %1468 = vmatprep.subr.mxu0 0.0
    %1469 = vmatpush2.msra.mxu0 0.0
    %1470 = vmatprep.mubr.f32.mxu0 0.0
    %1471 = vmatmul.mubr.f32.gmra.mxu0 %v1401
    %v1472 = vpop.f32.mrf.mxu0
    %v1473 = vadd.f32 %v1399, %v1472
    %v1474 = vpop.f32.mrf.mxu0
    %1475 = vmatprep.mubr.f32.mxu0 0.0
    %1476 = vmatmul.mubr.f32.gmra.mxu0 %v1404
    %v1477 = vpop.f32.mrf.mxu0
    %v1478 = vadd.f32 %v1399, %v1477
    %v1479 = vpop.f32.mrf.mxu0
    %1480 = vdwg.mxu0
    %v1481 = vadd.f32 %v927, %v1473
    %v1482 = vadd.f32 %v928, %v1478
    %v1483 = vsel %vm95, %v1481, 0.0
    %1484 = vadd.xlane.f32.xlu0 %v1483
    %v1485 = vpop.xlane.xlu0 %1484
    %v1486 = vsel %vm95, %v1482, 0.0
    %1487 = vadd.xlane.f32.xlu0 %v1486
    %v1488 = vpop.xlane.xlu0 %1487
    %v1489 = vmul.f32 %v1485, %v676
    %v1490 = vmul.f32 %v1488, %v676
    %v1491 = vsub.f32 %v1481, %v1489
    %v1492 = vsub.f32 %v1482, %v1490
    %v1493 = vmul.f32 %v1491, %v1491
    %v1494 = vmul.f32 %v1492, %v1492
    %v1495 = vsel %vm95, %v1493, 0.0
    %1496 = vadd.xlane.f32.xlu0 %v1495
    %v1497 = vpop.xlane.xlu0 %1496
    %v1498 = vsel %vm95, %v1494, 0.0
    %1499 = vadd.xlane.f32.xlu0 %v1498
    %v1500 = vpop.xlane.xlu0 %1499
    %v1501 = vmul.f32 %v1497, %v676
    %v1502 = vmul.f32 %v1500, %v676
    %v1503 = vadd.f32 %v1501, 1e-12
    %v1504 = vadd.f32 %v1502, 1e-12
    %v1505 = vrsqrt.pop %v1503
    %v1506 = vrsqrt.pop %v1504
    %v1507 = vmul.f32 %v1491, %v1505
    %v1508 = vmul.f32 %v1492, %v1506
    %v1509 = vlaneseq
    %v1510 = vshrl.u32 %v1509, 7
    %v1511 = vsub.s32 2, %v1510
    %v1512 = vrot.slane %v954, %v1511
    %v1513 = vmul.f32 %v1507, %v1512
    %v1514 = vmul.f32 %v1508, %v1512
    %v1515 = vlaneseq
    %v1516 = vshrl.u32 %v1515, 7
    %v1517 = vsub.s32 3, %v1516
    %v1518 = vrot.slane %v954, %v1517
    %v1519 = vadd.f32 %v1513, %v1518
    %v1520 = vadd.f32 %v1514, %v1518
    %v1521 = vlaneseq
    %v1522 = vshrl.u32 %v1521, 7
    %v1523 = vsub.s32 4, %v1522
    %v1524 = vrot.slane %v954, %v1523
    %v1526 = vsel %vm95, %v1519, 0
    %v1529 = vsel %vm95, %v1520, 0
    %1531 = vmatprep.subr.mxu0 0.0
    %1532 = vmatpush1.msra.mxu0 0.0
    %1533 = vmatprep.subr.mxu0 0.0
    %1534 = vmatpush1.msra.mxu0 0.0
    %1535 = vmatprep.subr.mxu0 0.0
    %1536 = vmatpush1.msra.mxu0 0.0
    %1537 = vmatprep.subr.mxu0 0.0
    %1538 = vmatpush1.msra.mxu0 0.0
    %1539 = vmatprep.subr.mxu0 0.0
    %1540 = vmatpush1.msra.mxu0 0.0
    %1541 = vmatprep.subr.mxu0 0.0
    %1542 = vmatpush1.msra.mxu0 0.0
    %1543 = vmatprep.subr.mxu0 0.0
    %1544 = vmatpush1.msra.mxu0 0.0
    %1545 = vmatprep.subr.mxu0 0.0
    %1546 = vmatpush1.msra.mxu0 0.0
    %1547 = vmatprep.subr.mxu0 0.0
    %1548 = vmatpush1.msra.mxu0 0.0
    %1549 = vmatprep.subr.mxu0 0.0
    %1550 = vmatpush1.msra.mxu0 0.0
    %1551 = vmatprep.subr.mxu0 0.0
    %1552 = vmatpush1.msra.mxu0 0.0
    %1553 = vmatprep.subr.mxu0 0.0
    %1554 = vmatpush1.msra.mxu0 0.0
    %1555 = vmatprep.subr.mxu0 0.0
    %1556 = vmatpush1.msra.mxu0 %v943
    %1557 = vmatprep.subr.mxu0 0.0
    %1558 = vmatpush1.msra.mxu0 %v942
    %1559 = vmatprep.subr.mxu0 0.0
    %1560 = vmatpush1.msra.mxu0 %v941
    %1561 = vmatprep.subr.mxu0 0.0
    %1562 = vmatpush1.msra.mxu0 %v940
    %1563 = vmatprep.subr.mxu0 0.0
    %1564 = vmatpush2.msra.mxu0 0.0
    %1565 = vmatprep.subr.mxu0 0.0
    %1566 = vmatpush2.msra.mxu0 0.0
    %1567 = vmatprep.subr.mxu0 0.0
    %1568 = vmatpush2.msra.mxu0 0.0
    %1569 = vmatprep.subr.mxu0 0.0
    %1570 = vmatpush2.msra.mxu0 0.0
    %1571 = vmatprep.subr.mxu0 0.0
    %1572 = vmatpush2.msra.mxu0 0.0
    %1573 = vmatprep.subr.mxu0 0.0
    %1574 = vmatpush2.msra.mxu0 0.0
    %1575 = vmatprep.subr.mxu0 0.0
    %1576 = vmatpush2.msra.mxu0 0.0
    %1577 = vmatprep.subr.mxu0 0.0
    %1578 = vmatpush2.msra.mxu0 0.0
    %1579 = vmatprep.subr.mxu0 0.0
    %1580 = vmatpush2.msra.mxu0 0.0
    %1581 = vmatprep.subr.mxu0 0.0
    %1582 = vmatpush2.msra.mxu0 0.0
    %1583 = vmatprep.subr.mxu0 0.0
    %1584 = vmatpush2.msra.mxu0 0.0
    %1585 = vmatprep.subr.mxu0 0.0
    %1586 = vmatpush2.msra.mxu0 0.0
    %1587 = vmatprep.subr.mxu0 0.0
    %1588 = vmatpush2.msra.mxu0 0.0
    %1589 = vmatprep.subr.mxu0 0.0
    %1590 = vmatpush2.msra.mxu0 0.0
    %1591 = vmatprep.subr.mxu0 0.0
    %1592 = vmatpush2.msra.mxu0 0.0
    %1593 = vmatprep.subr.mxu0 0.0
    %1594 = vmatpush2.msra.mxu0 0.0
    %1595 = vmatprep.mubr.f32.mxu0 0.0
    %1596 = vmatmul.mubr.f32.gmra.mxu0 %v1526
    %v1597 = vpop.f32.mrf.mxu0
    %v1598 = vadd.f32 %v1524, %v1597
    %v1599 = vpop.f32.mrf.mxu0
    %1600 = vmatprep.mubr.f32.mxu0 0.0
    %1601 = vmatmul.mubr.f32.gmra.mxu0 %v1529
    %v1602 = vpop.f32.mrf.mxu0
    %v1603 = vadd.f32 %v1524, %v1602
    %v1604 = vpop.f32.mrf.mxu0
    %1605 = vdwg.mxu0
    %v1606 = vmul.f32 %v1598, 0.5
    %v1607 = vmul.f32 %v1603, 0.5
    %v1608 = vmul.f32 %v1598, 0.70710677
    %v1609 = vmul.f32 %v1603, 0.70710677
    %v1610 = verf.f32.pop %v1608
    %v1611 = verf.f32.pop %v1609
    %v1612 = vadd.f32 %v1610, 1.0
    %v1613 = vadd.f32 %v1611, 1.0
    %v1614 = vmul.f32 %v1606, %v1612
    %v1615 = vmul.f32 %v1607, %v1613
    %v1616 = vlaneseq
    %v1617 = vshrl.u32 %v1616, 7
    %v1618 = vsub.s32 5, %v1617
    %v1619 = vrot.slane %v954, %v1618
    %v1621 = vsel %vm370, %v1614, 0
    %v1624 = vsel %vm370, %v1615, 0
    %1626 = vmatprep.subr.mxu0 0.0
    %1627 = vmatpush1.msra.mxu0 0.0
    %1628 = vmatprep.subr.mxu0 0.0
    %1629 = vmatpush1.msra.mxu0 0.0
    %1630 = vmatprep.subr.mxu0 0.0
    %1631 = vmatpush1.msra.mxu0 0.0
    %1632 = vmatprep.subr.mxu0 0.0
    %1633 = vmatpush1.msra.mxu0 0.0
    %1634 = vmatprep.subr.mxu0 0.0
    %1635 = vmatpush1.msra.mxu0 0.0
    %1636 = vmatprep.subr.mxu0 0.0
    %1637 = vmatpush1.msra.mxu0 0.0
    %1638 = vmatprep.subr.mxu0 0.0
    %1639 = vmatpush1.msra.mxu0 0.0
    %1640 = vmatprep.subr.mxu0 0.0
    %1641 = vmatpush1.msra.mxu0 0.0
    %1642 = vmatprep.subr.mxu0 0.0
    %1643 = vmatpush1.msra.mxu0 %v952
    %1644 = vmatprep.subr.mxu0 0.0
    %1645 = vmatpush1.msra.mxu0 %v951
    %1646 = vmatprep.subr.mxu0 0.0
    %1647 = vmatpush1.msra.mxu0 %v950
    %1648 = vmatprep.subr.mxu0 0.0
    %1649 = vmatpush1.msra.mxu0 %v949
    %1650 = vmatprep.subr.mxu0 0.0
    %1651 = vmatpush1.msra.mxu0 %v948
    %1652 = vmatprep.subr.mxu0 0.0
    %1653 = vmatpush1.msra.mxu0 %v947
    %1654 = vmatprep.subr.mxu0 0.0
    %1655 = vmatpush1.msra.mxu0 %v946
    %1656 = vmatprep.subr.mxu0 0.0
    %1657 = vmatpush1.msra.mxu0 %v945
    %1658 = vmatprep.subr.mxu0 0.0
    %1659 = vmatpush2.msra.mxu0 0.0
    %1660 = vmatprep.subr.mxu0 0.0
    %1661 = vmatpush2.msra.mxu0 0.0
    %1662 = vmatprep.subr.mxu0 0.0
    %1663 = vmatpush2.msra.mxu0 0.0
    %1664 = vmatprep.subr.mxu0 0.0
    %1665 = vmatpush2.msra.mxu0 0.0
    %1666 = vmatprep.subr.mxu0 0.0
    %1667 = vmatpush2.msra.mxu0 0.0
    %1668 = vmatprep.subr.mxu0 0.0
    %1669 = vmatpush2.msra.mxu0 0.0
    %1670 = vmatprep.subr.mxu0 0.0
    %1671 = vmatpush2.msra.mxu0 0.0
    %1672 = vmatprep.subr.mxu0 0.0
    %1673 = vmatpush2.msra.mxu0 0.0
    %1674 = vmatprep.subr.mxu0 0.0
    %1675 = vmatpush2.msra.mxu0 0.0
    %1676 = vmatprep.subr.mxu0 0.0
    %1677 = vmatpush2.msra.mxu0 0.0
    %1678 = vmatprep.subr.mxu0 0.0
    %1679 = vmatpush2.msra.mxu0 0.0
    %1680 = vmatprep.subr.mxu0 0.0
    %1681 = vmatpush2.msra.mxu0 0.0
    %1682 = vmatprep.subr.mxu0 0.0
    %1683 = vmatpush2.msra.mxu0 0.0
    %1684 = vmatprep.subr.mxu0 0.0
    %1685 = vmatpush2.msra.mxu0 0.0
    %1686 = vmatprep.subr.mxu0 0.0
    %1687 = vmatpush2.msra.mxu0 0.0
    %1688 = vmatprep.subr.mxu0 0.0
    %1689 = vmatpush2.msra.mxu0 0.0
    %1690 = vmatprep.mubr.f32.mxu0 0.0
    %1691 = vmatmul.mubr.f32.gmra.mxu0 %v1621
    %v1692 = vpop.f32.mrf.mxu0
    %v1693 = vadd.f32 %v1619, %v1692
    %v1694 = vpop.f32.mrf.mxu0
    %1695 = vmatprep.mubr.f32.mxu0 0.0
    %1696 = vmatmul.mubr.f32.gmra.mxu0 %v1624
    %v1697 = vpop.f32.mrf.mxu0
    %v1698 = vadd.f32 %v1619, %v1697
    %v1699 = vpop.f32.mrf.mxu0
    %1700 = vdwg.mxu0
    %v1701 = vadd.f32 %v1693, %v1519
    %v1702 = vadd.f32 %v1698, %v1520
    %v1703 = vsel %vm95, %v1701, 0.0
    %1704 = vadd.xlane.f32.xlu0 %v1703
    %v1705 = vpop.xlane.xlu0 %1704
    %v1706 = vsel %vm95, %v1702, 0.0
    %1707 = vadd.xlane.f32.xlu0 %v1706
    %v1708 = vpop.xlane.xlu0 %1707
    %v1709 = vmul.f32 %v1705, %v676
    %v1710 = vmul.f32 %v1708, %v676
    %v1711 = vsub.f32 %v1701, %v1709
    %v1712 = vsub.f32 %v1702, %v1710
    %v1713 = vmul.f32 %v1711, %v1711
    %v1714 = vmul.f32 %v1712, %v1712
    %v1715 = vsel %vm95, %v1713, 0.0
    %1716 = vadd.xlane.f32.xlu0 %v1715
    %v1717 = vpop.xlane.xlu0 %1716
    %v1718 = vsel %vm95, %v1714, 0.0
    %1719 = vadd.xlane.f32.xlu0 %v1718
    %v1720 = vpop.xlane.xlu0 %1719
    %v1721 = vmul.f32 %v1717, %v676
    %v1722 = vmul.f32 %v1720, %v676
    %v1723 = vadd.f32 %v1721, 1e-12
    %v1724 = vadd.f32 %v1722, 1e-12
    %v1725 = vrsqrt.pop %v1723
    %v1726 = vrsqrt.pop %v1724
    %v1727 = vmul.f32 %v1711, %v1725
    %v1728 = vmul.f32 %v1712, %v1726
    %v1729 = vlaneseq
    %v1730 = vshrl.u32 %v1729, 7
    %v1731 = vsub.s32 6, %v1730
    %v1732 = vrot.slane %v954, %v1731
    %v1733 = vmul.f32 %v1727, %v1732
    %v1734 = vmul.f32 %v1728, %v1732
    %v1735 = vlaneseq
    %v1736 = vshrl.u32 %v1735, 7
    %v1737 = vsub.s32 7, %v1736
    %v1738 = vrot.slane %v954, %v1737
    %v1739 = vadd.f32 %v1733, %v1738
    %v1740 = vadd.f32 %v1734, %v1738
    %1741 = vst.msk [vmem:[#allocation5] sm:$0xff] %vm95, %v1739
    %1742 = vst.msk [vmem:[#allocation5 + $0x8] sm:$0xff] %vm95, %v1740
    // Predicated region
    $region42: #{tpu_custom_call.1} parent=1 // pred_check
      _
    $region43: #{tpu_custom_call.1} parent=1 // pred_check_branch
      %1744 = sbr.rel (0) target = $region45
    $region44: #{tpu_custom_call.1} parent=1 // pred_region
      %s1746 = ssub.s32 256, 256
      %1747 = vsyncadd [#allocation4], %s1746
      %s1748 = sshll.u32 [#allocation5], 4
      %s1749 = int_to_ptr.vmem [resolvable:$true] %s1748
      %1754 = dma.vmem_to_hbm [thread:$0]  %s1749, 256, %s9, [#allocation4], 128, 128, 8
    $region45: #{tpu_custom_call.1} parent=1 // pred_fallthru
      _
    // Predicated region
    $region46: #{tpu_custom_call.1} parent=1 // pred_check
      _
    $region47: #{tpu_custom_call.1} parent=1 // pred_check_branch
      %1756 = sbr.rel (0) target = $region49
    $region48: #{tpu_custom_call.1} parent=1 // pred_region
      %s1758 = ssub.s32 256, 256
      %1759 = vsyncadd [#allocation7], %s1758
      %s1760 = sshll.u32 [#allocation6], 4
      %s1761 = int_to_ptr.vmem [resolvable:$true] %s1760
      %1766 = dma.vmem_to_hbm [thread:$0]  %s1761, 256, %s10, [#allocation7], 128, 128, 8
    $region49: #{tpu_custom_call.1} parent=1 // pred_fallthru
      _
    // Predicated region
    $region50: #{tpu_custom_call.1} parent=1 // pred_check
      _
    $region51: #{tpu_custom_call.1} parent=1 // pred_check_branch
      %1768 = sbr.rel (0) target = $region53
    $region52: #{tpu_custom_call.1} parent=1 // pred_region
      %1769 = dma.done [#allocation4], 256
    $region53: #{tpu_custom_call.1} parent=1 // pred_fallthru
      _
    // Predicated region
    $region54: #{tpu_custom_call.1} parent=1 // pred_check
      _
    $region55: #{tpu_custom_call.1} parent=1 // pred_check_branch
      %1771 = sbr.rel (0) target = $region57
    $region56: #{tpu_custom_call.1} parent=1 // pred_region
      %1772 = dma.done [#allocation7], 256
    $region57: #{tpu_custom_call.1} parent=1 // pred_fallthru
      _
    %1773 = vsyncpa [#allocation3], 1
    %1774 = vsyncpa [#allocation4], 1
    %1775 = vsyncpa [#allocation7], 1

</llo_original>
